<compile_context>
chip_gen: v6e
topology: v6e:2x2x1
jax: 0.10.0
libtpu: 0.0.40
codegen_flags: <defaults>
</compile_context>

<pallas_src>
import functools

import jax
import jax.numpy as jnp
from jax.experimental import pallas as pl
from jax.experimental.pallas import tpu as pltpu

IN_DIM = 28 * 28
ENC_DIMS = [(IN_DIM, 128), (128, 64), (64, 12), (12, 3)]
DEC_DIMS = [(3, 12), (12, 64), (64, 128), (128, IN_DIM)]


# ---------------------------------------------------------------------------
# Pallas kernel: one batch tile, full encoder + decoder
# ---------------------------------------------------------------------------
def _ae_kernel(x_ref,
               ew0, eb0, ew1, eb1, ew2, eb2, ew3, eb3,
               wsk, bsk, dw1, db1, dw2, db2, dw3, db3,
               enc_ref, dec_ref):
    x = x_ref[...]                                            # (TB, 784) bf16

    def lin(h_bf16, w_ref, b_ref):
        # bf16 x bf16 MXU matmul, f32 accumulation, f32 bias add.
        return jnp.dot(h_bf16, w_ref[...],
                       preferred_element_type=jnp.float32) + b_ref[...]

    def relu_bf16(y_f32):
        # ReLU in f32 (v5e has no bf16 VPU), cast back to bf16 for the next dot.
        return jnp.maximum(y_f32, 0.0).astype(jnp.bfloat16)

    # ----- encoder: Linear+ReLU x3, then Linear -----
    h = relu_bf16(lin(x, ew0, eb0))                           # 784 -> 128
    h = relu_bf16(lin(h, ew1, eb1))                           # 128 -> 64
    h12 = relu_bf16(lin(h, ew2, eb2))                         # 64  -> 12
    enc = lin(h12, ew3, eb3)                                  # 12  -> 3
    enc_ref[...] = enc.astype(enc_ref.dtype)

    # ----- decoder: first Linear fused through the 3-wide bottleneck -----
    # enc @ dw0 + db0 == h12 @ (ew3 @ dw0) + (eb3 @ dw0 + db0), fused in wrapper.
    h = relu_bf16(lin(h12, wsk, bsk))                         # (3 ->) 12, fused 12x12
    h = relu_bf16(lin(h, dw1, db1))                           # 12  -> 64
    h = relu_bf16(lin(h, dw2, db2))                           # 64  -> 128
    dec = jnp.tanh(lin(h, dw3, db3))                          # 128 -> 784, Tanh (f32)
    dec_ref[...] = dec.astype(dec_ref.dtype)


# ---------------------------------------------------------------------------
# Wrapper
# ---------------------------------------------------------------------------
def _round_up(n, m):
    return ((n + m - 1) // m) * m


def _prepare_kernel_params(params):
    """f32 (in,out) weights/biases -> bf16 weights, f32 biases, fused bottleneck."""
    (ew0, eb0, ew1, eb1, ew2, eb2, ew3, eb3,
     dw0, db0, dw1, db1, dw2, db2, dw3, db3) = params
    w_skip = ew3 @ dw0                       # (12, 12)  fused encoder-tail/decoder-head
    b_skip = eb3 @ dw0 + db0                 # (1, 12)
    weights = [ew0, ew1, ew2, ew3, w_skip, dw1, dw2, dw3]
    biases = [eb0, eb1, eb2, eb3, b_skip, db1, db2, db3]
    out = []
    for w, b in zip(weights, biases):
        out.append(w.astype(jnp.bfloat16))
        out.append(b.astype(jnp.float32))
    return out


@functools.partial(jax.jit, static_argnames=("tb",))
def autoencoder_forward(x, params, tb=1024):
    """x: (B, 784) float32.  params: flat list of 16 f32 arrays (8 W, 8 b).

    tb: max batch-tile rows.  Default 1024 fits comfortably in 32 MiB scoped VMEM
    on v5e/v6e/v7x (can be raised to ~2048 on v7x, larger on v5e/v6e with a
    higher vmem_limit_bytes).
    """
    B = x.shape[0]
    kparams = _prepare_kernel_params(params)

    TB = min(tb, _round_up(B, 8))            # TB is a multiple of 8 (sublane)
    B_pad = _round_up(B, TB)
    xb = x.astype(jnp.bfloat16)              # halve HBM bytes for the big input
    if B_pad != B:
        xb = jnp.pad(xb, ((0, B_pad - B), (0, 0)))

    def resident(a):                         # weights/biases stay in VMEM across steps
        return pl.BlockSpec(a.shape, lambda i: (0,) * a.ndim)

    in_specs = [pl.BlockSpec((TB, IN_DIM), lambda i: (i, 0))] + \
               [resident(p) for p in kparams]
    out_specs = (pl.BlockSpec((TB, 3), lambda i: (i, 0)),
                 pl.BlockSpec((TB, IN_DIM), lambda i: (i, 0)))

    macs_per_row = sum(m * n for m, n in
                       [(IN_DIM, 128), (128, 64), (64, 12), (12, 3),
                        (12, 12), (12, 64), (64, 128), (128, IN_DIM)])
    cost = pl.CostEstimate(
        flops=2 * B_pad * macs_per_row,
        transcendentals=B_pad * IN_DIM,                       # tanh on dec
        bytes_accessed=B_pad * (IN_DIM * 2 + IN_DIM * 4 + 3 * 4)
                       + sum(int(p.size) * p.dtype.itemsize for p in kparams))

    enc, dec = pl.pallas_call(
        _ae_kernel,
        out_shape=(jax.ShapeDtypeStruct((B_pad, 3), jnp.float32),
                   jax.ShapeDtypeStruct((B_pad, IN_DIM), jnp.float32)),
        grid=(B_pad // TB,),
        in_specs=in_specs,
        out_specs=out_specs,
        compiler_params=pltpu.CompilerParams(
            dimension_semantics=("parallel",),
            vmem_limit_bytes=32 * 1024 * 1024),
        cost_estimate=cost,
    )(xb, *kparams)
    return enc[:B], dec[:B]


# ---------------------------------------------------------------------------
# Deterministic parameter construction (PyTorch nn.Linear-style uniform init)
# ---------------------------------------------------------------------------
def make_params(key):
    params = []
    for (fan_in, fan_out) in ENC_DIMS + DEC_DIMS:
        key, kw, kb = jax.random.split(key, 3)
        bound = 1.0 / (fan_in ** 0.5)
        w = jax.random.uniform(kw, (fan_in, fan_out), jnp.float32, -bound, bound)
        b = jax.random.uniform(kb, (1, fan_out), jnp.float32, -bound, bound)
        params += [w, b]
    return params


def reference_forward(x, params):
    """Pure-JAX f32 reference of the PyTorch module forward."""
    (ew0, eb0, ew1, eb1, ew2, eb2, ew3, eb3,
     dw0, db0, dw1, db1, dw2, db2, dw3, db3) = params
    h = jnp.maximum(x @ ew0 + eb0, 0.0)
    h = jnp.maximum(h @ ew1 + eb1, 0.0)
    h = jnp.maximum(h @ ew2 + eb2, 0.0)
    enc = h @ ew3 + eb3
    h = jnp.maximum(enc @ dw0 + db0, 0.0)
    h = jnp.maximum(h @ dw1 + db1, 0.0)
    h = jnp.maximum(h @ dw2 + db2, 0.0)
    dec = jnp.tanh(h @ dw3 + db3)
    return enc, dec


if __name__ == "__main__":
    key = jax.random.PRNGKey(0)
    kx, kp = jax.random.split(key)

    B = 200                                           # exercises padding (-> 256) too
    x = jax.random.normal(kx, (B, IN_DIM), jnp.float32)
    params = make_params(kp)

    # tb=64 -> 4-step batch grid so the pipelined path is exercised at small scale.
    enc, dec = autoencoder_forward(x, params, tb=64)
    jax.block_until_ready((enc, dec))

    enc_ref, dec_ref = reference_forward(x, params)
    assert enc.shape == (B, 3) and dec.shape == (B, IN_DIM)
    # Kernel uses bf16 weights/activations for the matmuls -> loosened tolerances.
    assert jnp.allclose(enc, enc_ref, atol=5e-2, rtol=5e-2)
    assert jnp.allclose(dec, dec_ref, atol=5e-2, rtol=5e-2)

    print("KERNEL_OK")
</pallas_src>

<mosaic_0001>
module attributes {stable_mosaic.version = 11 : i64} {
  func.func @_ae_kernel(%arg0: i32, %arg1: memref<64x784xbf16, #tpu.memory_space<vmem>>, %arg2: memref<784x128xbf16, #tpu.memory_space<vmem>>, %arg3: memref<1x128xf32, #tpu.memory_space<vmem>>, %arg4: memref<128x64xbf16, #tpu.memory_space<vmem>>, %arg5: memref<1x64xf32, #tpu.memory_space<vmem>>, %arg6: memref<64x12xbf16, #tpu.memory_space<vmem>>, %arg7: memref<1x12xf32, #tpu.memory_space<vmem>>, %arg8: memref<12x3xbf16, #tpu.memory_space<vmem>>, %arg9: memref<1x3xf32, #tpu.memory_space<vmem>>, %arg10: memref<12x12xbf16, #tpu.memory_space<vmem>>, %arg11: memref<1x12xf32, #tpu.memory_space<vmem>>, %arg12: memref<12x64xbf16, #tpu.memory_space<vmem>>, %arg13: memref<1x64xf32, #tpu.memory_space<vmem>>, %arg14: memref<64x128xbf16, #tpu.memory_space<vmem>>, %arg15: memref<1x128xf32, #tpu.memory_space<vmem>>, %arg16: memref<128x784xbf16, #tpu.memory_space<vmem>>, %arg17: memref<1x784xf32, #tpu.memory_space<vmem>>, %arg18: memref<64x3xf32, #tpu.memory_space<vmem>>, %arg19: memref<64x784xf32, #tpu.memory_space<vmem>>) attributes {dimension_semantics = [#tpu.dimension_semantics<parallel>], iteration_bounds = array<i64: 4>, scalar_prefetch = 0 : i64, scratch_operands = 0 : i64, tpu.core_type = #tpu.core_type<tc>, window_params = [{transform_indices = @transform_0, window_bounds = array<i64: 64, 784>}, {pipeline_mode = #tpu.pipeline_mode<synchronous>, transform_indices = @transform_1, window_bounds = array<i64: 784, 128>}, {pipeline_mode = #tpu.pipeline_mode<synchronous>, transform_indices = @transform_2, window_bounds = array<i64: 1, 128>}, {pipeline_mode = #tpu.pipeline_mode<synchronous>, transform_indices = @transform_3, window_bounds = array<i64: 128, 64>}, {pipeline_mode = #tpu.pipeline_mode<synchronous>, transform_indices = @transform_4, window_bounds = array<i64: 1, 64>}, {pipeline_mode = #tpu.pipeline_mode<synchronous>, transform_indices = @transform_5, window_bounds = array<i64: 64, 12>}, {pipeline_mode = #tpu.pipeline_mode<synchronous>, transform_indices = @transform_6, window_bounds = array<i64: 1, 12>}, {pipeline_mode = #tpu.pipeline_mode<synchronous>, transform_indices = @transform_7, window_bounds = array<i64: 12, 3>}, {pipeline_mode = #tpu.pipeline_mode<synchronous>, transform_indices = @transform_8, window_bounds = array<i64: 1, 3>}, {pipeline_mode = #tpu.pipeline_mode<synchronous>, transform_indices = @transform_9, window_bounds = array<i64: 12, 12>}, {pipeline_mode = #tpu.pipeline_mode<synchronous>, transform_indices = @transform_10, window_bounds = array<i64: 1, 12>}, {pipeline_mode = #tpu.pipeline_mode<synchronous>, transform_indices = @transform_11, window_bounds = array<i64: 12, 64>}, {pipeline_mode = #tpu.pipeline_mode<synchronous>, transform_indices = @transform_12, window_bounds = array<i64: 1, 64>}, {pipeline_mode = #tpu.pipeline_mode<synchronous>, transform_indices = @transform_13, window_bounds = array<i64: 64, 128>}, {pipeline_mode = #tpu.pipeline_mode<synchronous>, transform_indices = @transform_14, window_bounds = array<i64: 1, 128>}, {pipeline_mode = #tpu.pipeline_mode<synchronous>, transform_indices = @transform_15, window_bounds = array<i64: 128, 784>}, {pipeline_mode = #tpu.pipeline_mode<synchronous>, transform_indices = @transform_16, window_bounds = array<i64: 1, 784>}, {transform_indices = @transform_17, window_bounds = array<i64: 64, 3>}, {transform_indices = @transform_18, window_bounds = array<i64: 64, 784>}]} {
    %c0 = arith.constant 0 : index
    %c0_0 = arith.constant 0 : index
    %0 = vector.load %arg1[%c0, %c0_0] : memref<64x784xbf16, #tpu.memory_space<vmem>>, vector<64x784xbf16>
    %c0_1 = arith.constant 0 : index
    %c0_2 = arith.constant 0 : index
    %1 = vector.load %arg2[%c0_1, %c0_2] : memref<784x128xbf16, #tpu.memory_space<vmem>>, vector<784x128xbf16>
    %cst = arith.constant dense<0.000000e+00> : vector<64x128xf32>
    %2 = tpu.matmul %0, %1, %cst {dimension_numbers = #tpu.dot_dimension_numbers<[1], [0], [0], [1], [0, 0, 1, 1], [], []>} : vector<64x784xbf16>, vector<784x128xbf16>, vector<64x128xf32> -> vector<64x128xf32>
    %c0_3 = arith.constant 0 : index
    %c0_4 = arith.constant 0 : index
    %3 = vector.load %arg3[%c0_3, %c0_4] : memref<1x128xf32, #tpu.memory_space<vmem>>, vector<1x128xf32>
    %4 = vector.broadcast %3 : vector<1x128xf32> to vector<64x128xf32>
    %5 = arith.addf %2, %4 : vector<64x128xf32>
    %cst_5 = arith.constant 0.000000e+00 : f32
    %6 = vector.broadcast %cst_5 : f32 to vector<64x128xf32>
    %7 = arith.maximumf %5, %6 : vector<64x128xf32>
    %8 = arith.truncf %7 : vector<64x128xf32> to vector<64x128xbf16>
    %c0_6 = arith.constant 0 : index
    %c0_7 = arith.constant 0 : index
    %9 = vector.load %arg4[%c0_6, %c0_7] : memref<128x64xbf16, #tpu.memory_space<vmem>>, vector<128x64xbf16>
    %cst_8 = arith.constant dense<0.000000e+00> : vector<64x64xf32>
    %10 = tpu.matmul %8, %9, %cst_8 {dimension_numbers = #tpu.dot_dimension_numbers<[1], [0], [0], [1], [0, 0, 1, 1], [], []>} : vector<64x128xbf16>, vector<128x64xbf16>, vector<64x64xf32> -> vector<64x64xf32>
    %c0_9 = arith.constant 0 : index
    %c0_10 = arith.constant 0 : index
    %11 = vector.load %arg5[%c0_9, %c0_10] : memref<1x64xf32, #tpu.memory_space<vmem>>, vector<1x64xf32>
    %12 = vector.broadcast %11 : vector<1x64xf32> to vector<64x64xf32>
    %13 = arith.addf %10, %12 : vector<64x64xf32>
    %cst_11 = arith.constant 0.000000e+00 : f32
    %14 = vector.broadcast %cst_11 : f32 to vector<64x64xf32>
    %15 = arith.maximumf %13, %14 : vector<64x64xf32>
    %16 = arith.truncf %15 : vector<64x64xf32> to vector<64x64xbf16>
    %c0_12 = arith.constant 0 : index
    %c0_13 = arith.constant 0 : index
    %17 = vector.load %arg6[%c0_12, %c0_13] : memref<64x12xbf16, #tpu.memory_space<vmem>>, vector<64x12xbf16>
    %cst_14 = arith.constant dense<0.000000e+00> : vector<64x12xf32>
    %18 = tpu.matmul %16, %17, %cst_14 {dimension_numbers = #tpu.dot_dimension_numbers<[1], [0], [0], [1], [0, 0, 1, 1], [], []>} : vector<64x64xbf16>, vector<64x12xbf16>, vector<64x12xf32> -> vector<64x12xf32>
    %c0_15 = arith.constant 0 : index
    %c0_16 = arith.constant 0 : index
    %19 = vector.load %arg7[%c0_15, %c0_16] : memref<1x12xf32, #tpu.memory_space<vmem>>, vector<1x12xf32>
    %20 = vector.broadcast %19 : vector<1x12xf32> to vector<64x12xf32>
    %21 = arith.addf %18, %20 : vector<64x12xf32>
    %cst_17 = arith.constant 0.000000e+00 : f32
    %22 = vector.broadcast %cst_17 : f32 to vector<64x12xf32>
    %23 = arith.maximumf %21, %22 : vector<64x12xf32>
    %24 = arith.truncf %23 : vector<64x12xf32> to vector<64x12xbf16>
    %c0_18 = arith.constant 0 : index
    %c0_19 = arith.constant 0 : index
    %25 = vector.load %arg8[%c0_18, %c0_19] : memref<12x3xbf16, #tpu.memory_space<vmem>>, vector<12x3xbf16>
    %cst_20 = arith.constant dense<0.000000e+00> : vector<64x3xf32>
    %26 = tpu.matmul %24, %25, %cst_20 {dimension_numbers = #tpu.dot_dimension_numbers<[1], [0], [0], [1], [0, 0, 1, 1], [], []>} : vector<64x12xbf16>, vector<12x3xbf16>, vector<64x3xf32> -> vector<64x3xf32>
    %c0_21 = arith.constant 0 : index
    %c0_22 = arith.constant 0 : index
    %27 = vector.load %arg9[%c0_21, %c0_22] : memref<1x3xf32, #tpu.memory_space<vmem>>, vector<1x3xf32>
    %28 = vector.broadcast %27 : vector<1x3xf32> to vector<64x3xf32>
    %29 = arith.addf %26, %28 : vector<64x3xf32>
    %c0_23 = arith.constant 0 : index
    %c0_24 = arith.constant 0 : index
    %30 = vector.load %arg18[%c0_23, %c0_24] : memref<64x3xf32, #tpu.memory_space<vmem>>, vector<64x3xf32>
    tpu.vector_store %arg18[%c0_23, %c0_24], %29 {strides = array<i32>} : memref<64x3xf32, #tpu.memory_space<vmem>>, vector<64x3xf32>,
    %c0_25 = arith.constant 0 : index
    %c0_26 = arith.constant 0 : index
    %31 = vector.load %arg10[%c0_25, %c0_26] : memref<12x12xbf16, #tpu.memory_space<vmem>>, vector<12x12xbf16>
    %cst_27 = arith.constant dense<0.000000e+00> : vector<64x12xf32>
    %32 = tpu.matmul %24, %31, %cst_27 {dimension_numbers = #tpu.dot_dimension_numbers<[1], [0], [0], [1], [0, 0, 1, 1], [], []>} : vector<64x12xbf16>, vector<12x12xbf16>, vector<64x12xf32> -> vector<64x12xf32>
    %c0_28 = arith.constant 0 : index
    %c0_29 = arith.constant 0 : index
    %33 = vector.load %arg11[%c0_28, %c0_29] : memref<1x12xf32, #tpu.memory_space<vmem>>, vector<1x12xf32>
    %34 = vector.broadcast %33 : vector<1x12xf32> to vector<64x12xf32>
    %35 = arith.addf %32, %34 : vector<64x12xf32>
    %cst_30 = arith.constant 0.000000e+00 : f32
    %36 = vector.broadcast %cst_30 : f32 to vector<64x12xf32>
    %37 = arith.maximumf %35, %36 : vector<64x12xf32>
    %38 = arith.truncf %37 : vector<64x12xf32> to vector<64x12xbf16>
    %c0_31 = arith.constant 0 : index
    %c0_32 = arith.constant 0 : index
    %39 = vector.load %arg12[%c0_31, %c0_32] : memref<12x64xbf16, #tpu.memory_space<vmem>>, vector<12x64xbf16>
    %cst_33 = arith.constant dense<0.000000e+00> : vector<64x64xf32>
    %40 = tpu.matmul %38, %39, %cst_33 {dimension_numbers = #tpu.dot_dimension_numbers<[1], [0], [0], [1], [0, 0, 1, 1], [], []>} : vector<64x12xbf16>, vector<12x64xbf16>, vector<64x64xf32> -> vector<64x64xf32>
    %c0_34 = arith.constant 0 : index
    %c0_35 = arith.constant 0 : index
    %41 = vector.load %arg13[%c0_34, %c0_35] : memref<1x64xf32, #tpu.memory_space<vmem>>, vector<1x64xf32>
    %42 = vector.broadcast %41 : vector<1x64xf32> to vector<64x64xf32>
    %43 = arith.addf %40, %42 : vector<64x64xf32>
    %cst_36 = arith.constant 0.000000e+00 : f32
    %44 = vector.broadcast %cst_36 : f32 to vector<64x64xf32>
    %45 = arith.maximumf %43, %44 : vector<64x64xf32>
    %46 = arith.truncf %45 : vector<64x64xf32> to vector<64x64xbf16>
    %c0_37 = arith.constant 0 : index
    %c0_38 = arith.constant 0 : index
    %47 = vector.load %arg14[%c0_37, %c0_38] : memref<64x128xbf16, #tpu.memory_space<vmem>>, vector<64x128xbf16>
    %cst_39 = arith.constant dense<0.000000e+00> : vector<64x128xf32>
    %48 = tpu.matmul %46, %47, %cst_39 {dimension_numbers = #tpu.dot_dimension_numbers<[1], [0], [0], [1], [0, 0, 1, 1], [], []>} : vector<64x64xbf16>, vector<64x128xbf16>, vector<64x128xf32> -> vector<64x128xf32>
    %c0_40 = arith.constant 0 : index
    %c0_41 = arith.constant 0 : index
    %49 = vector.load %arg15[%c0_40, %c0_41] : memref<1x128xf32, #tpu.memory_space<vmem>>, vector<1x128xf32>
    %50 = vector.broadcast %49 : vector<1x128xf32> to vector<64x128xf32>
    %51 = arith.addf %48, %50 : vector<64x128xf32>
    %cst_42 = arith.constant 0.000000e+00 : f32
    %52 = vector.broadcast %cst_42 : f32 to vector<64x128xf32>
    %53 = arith.maximumf %51, %52 : vector<64x128xf32>
    %54 = arith.truncf %53 : vector<64x128xf32> to vector<64x128xbf16>
    %c0_43 = arith.constant 0 : index
    %c0_44 = arith.constant 0 : index
    %55 = vector.load %arg16[%c0_43, %c0_44] : memref<128x784xbf16, #tpu.memory_space<vmem>>, vector<128x784xbf16>
    %cst_45 = arith.constant dense<0.000000e+00> : vector<64x784xf32>
    %56 = tpu.matmul %54, %55, %cst_45 {dimension_numbers = #tpu.dot_dimension_numbers<[1], [0], [0], [1], [0, 0, 1, 1], [], []>} : vector<64x128xbf16>, vector<128x784xbf16>, vector<64x784xf32> -> vector<64x784xf32>
    %c0_46 = arith.constant 0 : index
    %c0_47 = arith.constant 0 : index
    %57 = vector.load %arg17[%c0_46, %c0_47] : memref<1x784xf32, #tpu.memory_space<vmem>>, vector<1x784xf32>
    %58 = vector.broadcast %57 : vector<1x784xf32> to vector<64x784xf32>
    %59 = arith.addf %56, %58 : vector<64x784xf32>
    %60 = math.tanh %59 : vector<64x784xf32>
    %c0_48 = arith.constant 0 : index
    %c0_49 = arith.constant 0 : index
    %61 = vector.load %arg19[%c0_48, %c0_49] : memref<64x784xf32, #tpu.memory_space<vmem>>, vector<64x784xf32>
    tpu.vector_store %arg19[%c0_48, %c0_49], %60 {strides = array<i32>} : memref<64x784xf32, #tpu.memory_space<vmem>>, vector<64x784xf32>,
    return
  }
  func.func @transform_0(%arg0: i32) -> (i32, i32) {
    %c0_i32 = arith.constant 0 : i32
    %c0_i32_0 = arith.constant 0 : i32
    return %arg0, %c0_i32 : i32, i32
  }
  func.func @transform_1(%arg0: i32) -> (i32, i32) {
    %c0_i32 = arith.constant 0 : i32
    %c0_i32_0 = arith.constant 0 : i32
    %c0_i32_1 = arith.constant 0 : i32
    return %c0_i32, %c0_i32_0 : i32, i32
  }
  func.func @transform_2(%arg0: i32) -> (i32, i32) {
    %c0_i32 = arith.constant 0 : i32
    %c0_i32_0 = arith.constant 0 : i32
    %c0_i32_1 = arith.constant 0 : i32
    return %c0_i32, %c0_i32_0 : i32, i32
  }
  func.func @transform_3(%arg0: i32) -> (i32, i32) {
    %c0_i32 = arith.constant 0 : i32
    %c0_i32_0 = arith.constant 0 : i32
    %c0_i32_1 = arith.constant 0 : i32
    return %c0_i32, %c0_i32_0 : i32, i32
  }
  func.func @transform_4(%arg0: i32) -> (i32, i32) {
    %c0_i32 = arith.constant 0 : i32
    %c0_i32_0 = arith.constant 0 : i32
    %c0_i32_1 = arith.constant 0 : i32
    return %c0_i32, %c0_i32_0 : i32, i32
  }
  func.func @transform_5(%arg0: i32) -> (i32, i32) {
    %c0_i32 = arith.constant 0 : i32
    %c0_i32_0 = arith.constant 0 : i32
    %c0_i32_1 = arith.constant 0 : i32
    return %c0_i32, %c0_i32_0 : i32, i32
  }
  func.func @transform_6(%arg0: i32) -> (i32, i32) {
    %c0_i32 = arith.constant 0 : i32
    %c0_i32_0 = arith.constant 0 : i32
    %c0_i32_1 = arith.constant 0 : i32
    return %c0_i32, %c0_i32_0 : i32, i32
  }
  func.func @transform_7(%arg0: i32) -> (i32, i32) {
    %c0_i32 = arith.constant 0 : i32
    %c0_i32_0 = arith.constant 0 : i32
    %c0_i32_1 = arith.constant 0 : i32
    return %c0_i32, %c0_i32_0 : i32, i32
  }
  func.func @transform_8(%arg0: i32) -> (i32, i32) {
    %c0_i32 = arith.constant 0 : i32
    %c0_i32_0 = arith.constant 0 : i32
    %c0_i32_1 = arith.constant 0 : i32
    return %c0_i32, %c0_i32_0 : i32, i32
  }
  func.func @transform_9(%arg0: i32) -> (i32, i32) {
    %c0_i32 = arith.constant 0 : i32
    %c0_i32_0 = arith.constant 0 : i32
    %c0_i32_1 = arith.constant 0 : i32
    return %c0_i32, %c0_i32_0 : i32, i32
  }
  func.func @transform_10(%arg0: i32) -> (i32, i32) {
    %c0_i32 = arith.constant 0 : i32
    %c0_i32_0 = arith.constant 0 : i32
    %c0_i32_1 = arith.constant 0 : i32
    return %c0_i32, %c0_i32_0 : i32, i32
  }
  func.func @transform_11(%arg0: i32) -> (i32, i32) {
    %c0_i32 = arith.constant 0 : i32
    %c0_i32_0 = arith.constant 0 : i32
    %c0_i32_1 = arith.constant 0 : i32
    return %c0_i32, %c0_i32_0 : i32, i32
  }
  func.func @transform_12(%arg0: i32) -> (i32, i32) {
    %c0_i32 = arith.constant 0 : i32
    %c0_i32_0 = arith.constant 0 : i32
    %c0_i32_1 = arith.constant 0 : i32
    return %c0_i32, %c0_i32_0 : i32, i32
  }
  func.func @transform_13(%arg0: i32) -> (i32, i32) {
    %c0_i32 = arith.constant 0 : i32
    %c0_i32_0 = arith.constant 0 : i32
    %c0_i32_1 = arith.constant 0 : i32
    return %c0_i32, %c0_i32_0 : i32, i32
  }
  func.func @transform_14(%arg0: i32) -> (i32, i32) {
    %c0_i32 = arith.constant 0 : i32
    %c0_i32_0 = arith.constant 0 : i32
    %c0_i32_1 = arith.constant 0 : i32
    return %c0_i32, %c0_i32_0 : i32, i32
  }
  func.func @transform_15(%arg0: i32) -> (i32, i32) {
    %c0_i32 = arith.constant 0 : i32
    %c0_i32_0 = arith.constant 0 : i32
    %c0_i32_1 = arith.constant 0 : i32
    return %c0_i32, %c0_i32_0 : i32, i32
  }
  func.func @transform_16(%arg0: i32) -> (i32, i32) {
    %c0_i32 = arith.constant 0 : i32
    %c0_i32_0 = arith.constant 0 : i32
    %c0_i32_1 = arith.constant 0 : i32
    return %c0_i32, %c0_i32_0 : i32, i32
  }
  func.func @transform_17(%arg0: i32) -> (i32, i32) {
    %c0_i32 = arith.constant 0 : i32
    %c0_i32_0 = arith.constant 0 : i32
    return %arg0, %c0_i32 : i32, i32
  }
  func.func @transform_18(%arg0: i32) -> (i32, i32) {
    %c0_i32 = arith.constant 0 : i32
    %c0_i32_0 = arith.constant 0 : i32
    return %arg0, %c0_i32 : i32, i32
  }
}

</mosaic_0001>

<llo_original>
// kernel: autoencoder_forward.1
$region0: #{autoencoder_forward.1}
  #allocation0 [shape = 'u32[]', space=smem, size = 0x4, offset = 0x4, fixed_abs, tag = 'smem constant byte address 0x4 - core index']
  #allocation1 [shape = 'u32[144,128]{1,0:T(1,128)}', space=vmem, size = 0x12000, scoped, tag = 'internal scratch']
  %s0 = inlined_call_operand.vmem [shape: bf16[256,784], index: 0, kind: input, shape index: {}]
  %s1 = inlined_call_operand.vmem [shape: bf16[784,128], index: 1, kind: input, shape index: {}]
  %s2 = inlined_call_operand.vmem [shape: f32[1,128], index: 2, kind: input, shape index: {}]
  %s3 = inlined_call_operand.vmem [shape: bf16[128,64], index: 3, kind: input, shape index: {}]
  %s4 = inlined_call_operand.vmem [shape: f32[1,64], index: 4, kind: input, shape index: {}]
  %s5 = inlined_call_operand.vmem [shape: bf16[64,12], index: 5, kind: input, shape index: {}]
  %s6 = inlined_call_operand.vmem [shape: f32[1,12], index: 6, kind: input, shape index: {}]
  %s7 = inlined_call_operand.vmem [shape: bf16[12,3], index: 7, kind: input, shape index: {}]
  %s8 = inlined_call_operand.vmem [shape: f32[1,3], index: 8, kind: input, shape index: {}]
  %s9 = inlined_call_operand.vmem [shape: bf16[12,12], index: 9, kind: input, shape index: {}]
  %s10 = inlined_call_operand.vmem [shape: f32[1,12], index: 10, kind: input, shape index: {}]
  %s11 = inlined_call_operand.vmem [shape: bf16[12,64], index: 11, kind: input, shape index: {}]
  %s12 = inlined_call_operand.vmem [shape: f32[1,64], index: 12, kind: input, shape index: {}]
  %s13 = inlined_call_operand.vmem [shape: bf16[64,128], index: 13, kind: input, shape index: {}]
  %s14 = inlined_call_operand.vmem [shape: f32[1,128], index: 14, kind: input, shape index: {}]
  %s15 = inlined_call_operand.vmem [shape: bf16[128,784], index: 15, kind: input, shape index: {}]
  %s16 = inlined_call_operand.vmem [shape: f32[1,784], index: 16, kind: input, shape index: {}]
  %s17 = inlined_call_operand.vmem [shape: f32[256,3], index: 17, kind: output, shape index: {0}]
  %s18 = inlined_call_operand.vmem [shape: f32[256,784], index: 18, kind: output, shape index: {1}]
  %19 = xla_tuple %s17, %s18
  %s20 = sld [smem:[#allocation0]]
  $region109: #{autoencoder_forward.1} parent=0
    _
  %s22 = ssub.s32 1, %s20
  %s23 = scalar_select 0, %s22, %s20
  loop: start=0, step=1, limit=6
  $region2: #{autoencoder_forward.1} parent=0 // loop_pre_header
    _
  $region3: #{autoencoder_forward.1} parent=0 // loop_header
    %s25 = sphi 0, %s29
    %p26 = scmp.ge.s32.totalorder %s25, 6
    %s35 = sphi 0, %s37
    %s38 = sphi 0, %s35
    %s39 = sphi 0, %s38
    %s55 = sphi 0, %s39
    %s59 = sphi 0, %s59
    %s61 = sphi 0, %s59
    %s62 = sphi 0, %s61
    %s76 = sphi 0, %s62
    %s80 = sphi 0, %s80
    %s82 = sphi 0, %s80
    %s83 = sphi 0, %s82
    %s97 = sphi 0, %s83
    %s101 = sphi 0, %s101
    %s103 = sphi 0, %s101
    %s104 = sphi 0, %s103
    %s118 = sphi 0, %s104
    %s122 = sphi 0, %s122
    %s124 = sphi 0, %s122
    %s125 = sphi 0, %s124
    %s139 = sphi 0, %s125
    %s143 = sphi 0, %s143
    %s145 = sphi 0, %s143
    %s146 = sphi 0, %s145
    %s160 = sphi 0, %s146
    %s164 = sphi 0, %s164
    %s166 = sphi 0, %s164
    %s167 = sphi 0, %s166
    %s181 = sphi 0, %s167
    %s185 = sphi 0, %s185
    %s187 = sphi 0, %s185
    %s188 = sphi 0, %s187
    %s202 = sphi 0, %s188
    %s206 = sphi 0, %s206
    %s208 = sphi 0, %s206
    %s209 = sphi 0, %s208
    %s223 = sphi 0, %s209
    %s227 = sphi 0, %s227
    %s229 = sphi 0, %s227
    %s230 = sphi 0, %s229
    %s244 = sphi 0, %s230
    %s248 = sphi 0, %s248
    %s250 = sphi 0, %s248
    %s251 = sphi 0, %s250
    %s265 = sphi 0, %s251
    %s269 = sphi 0, %s269
    %s271 = sphi 0, %s269
    %s272 = sphi 0, %s271
    %s286 = sphi 0, %s272
    %s290 = sphi 0, %s290
    %s292 = sphi 0, %s290
    %s293 = sphi 0, %s292
    %s307 = sphi 0, %s293
    %s311 = sphi 0, %s311
    %s313 = sphi 0, %s311
    %s314 = sphi 0, %s313
    %s328 = sphi 0, %s314
    %s332 = sphi 0, %s332
    %s334 = sphi 0, %s332
    %s335 = sphi 0, %s334
    %s349 = sphi 0, %s335
    %s353 = sphi 0, %s353
    %s355 = sphi 0, %s353
    %s356 = sphi 0, %s355
    %s370 = sphi 0, %s356
    %s374 = sphi 0, %s374
    %s376 = sphi 0, %s374
    %s377 = sphi 0, %s376
    %s391 = sphi 0, %s377
    %s397 = sphi 0, %s399
    %s400 = sphi 0, %s397
    %s401 = sphi 0, %s400
    %s417 = sphi 0, %s401
    %s423 = sphi 0, %s425
    %s426 = sphi 0, %s423
    %s427 = sphi 0, %s426
    %s443 = sphi 0, %s427
  $region4: #{autoencoder_forward.1} parent=0 // loop_header_branch
    %28 = sbr.rel (%p26) target = $region8
  $region5: #{autoencoder_forward.1} parent=0 // loop_body
    %s30 = ssub.s32 %s25, 1
    %s31 = ssub.s32 %s25, 2
    %s32 = sadd.s32 %s25, 1
    %s33 = ssub.s32 %s25, %s32
    %p34 = scmp.eq.s32.totalorder %s33, 0
    %s36 = sadd.s32 %s35, 1
    %s37 = scalar_select %p34, %s35, %s36
    %p40 = pneg %p34
    %p41 = scmp.eq.s32.totalorder %s25, 3
    %p42 = por %p40, %p41
    %p43 = scmp.ne.s32.totalorder %s35, %s38
    %p44 = scmp.eq.s32.totalorder %s25, 0
    %p45 = por %p43, %p44
    %p46 = scmp.ne.s32.totalorder %s35, %s38
    %p47 = scmp.eq.s32.totalorder %s30, 3
    %p48 = por %p46, %p47
    %p49 = scmp.ne.s32.totalorder %s38, %s39
    %p50 = scmp.eq.s32.totalorder %s30, 0
    %p51 = por %p49, %p50
    %p52 = scmp.ne.s32.totalorder %s38, %s39
    %p53 = scmp.eq.s32.totalorder %s31, 3
    %p54 = por %p52, %p53
    %p56 = scmp.ne.s32.totalorder %s39, %s55
    %p57 = scmp.eq.s32.totalorder %s31, 0
    %p58 = por %p56, %p57
    %s60 = sadd.s32 %s59, 1
    %p63 = scmp.eq.s32.totalorder %s25, 3
    %p64 = scmp.ne.s32.totalorder %s59, %s61
    %p65 = scmp.eq.s32.totalorder %s25, 0
    %p66 = por %p64, %p65
    %p67 = scmp.ne.s32.totalorder %s59, %s61
    %p68 = scmp.eq.s32.totalorder %s30, 3
    %p69 = por %p67, %p68
    %p70 = scmp.ne.s32.totalorder %s61, %s62
    %p71 = scmp.eq.s32.totalorder %s30, 0
    %p72 = por %p70, %p71
    %p73 = scmp.ne.s32.totalorder %s61, %s62
    %p74 = scmp.eq.s32.totalorder %s31, 3
    %p75 = por %p73, %p74
    %p77 = scmp.ne.s32.totalorder %s62, %s76
    %p78 = scmp.eq.s32.totalorder %s31, 0
    %p79 = por %p77, %p78
    %s81 = sadd.s32 %s80, 1
    %p84 = scmp.eq.s32.totalorder %s25, 3
    %p85 = scmp.ne.s32.totalorder %s80, %s82
    %p86 = scmp.eq.s32.totalorder %s25, 0
    %p87 = por %p85, %p86
    %p88 = scmp.ne.s32.totalorder %s80, %s82
    %p89 = scmp.eq.s32.totalorder %s30, 3
    %p90 = por %p88, %p89
    %p91 = scmp.ne.s32.totalorder %s82, %s83
    %p92 = scmp.eq.s32.totalorder %s30, 0
    %p93 = por %p91, %p92
    %p94 = scmp.ne.s32.totalorder %s82, %s83
    %p95 = scmp.eq.s32.totalorder %s31, 3
    %p96 = por %p94, %p95
    %p98 = scmp.ne.s32.totalorder %s83, %s97
    %p99 = scmp.eq.s32.totalorder %s31, 0
    %p100 = por %p98, %p99
    %s102 = sadd.s32 %s101, 1
    %p105 = scmp.eq.s32.totalorder %s25, 3
    %p106 = scmp.ne.s32.totalorder %s101, %s103
    %p107 = scmp.eq.s32.totalorder %s25, 0
    %p108 = por %p106, %p107
    %p109 = scmp.ne.s32.totalorder %s101, %s103
    %p110 = scmp.eq.s32.totalorder %s30, 3
    %p111 = por %p109, %p110
    %p112 = scmp.ne.s32.totalorder %s103, %s104
    %p113 = scmp.eq.s32.totalorder %s30, 0
    %p114 = por %p112, %p113
    %p115 = scmp.ne.s32.totalorder %s103, %s104
    %p116 = scmp.eq.s32.totalorder %s31, 3
    %p117 = por %p115, %p116
    %p119 = scmp.ne.s32.totalorder %s104, %s118
    %p120 = scmp.eq.s32.totalorder %s31, 0
    %p121 = por %p119, %p120
    %s123 = sadd.s32 %s122, 1
    %p126 = scmp.eq.s32.totalorder %s25, 3
    %p127 = scmp.ne.s32.totalorder %s122, %s124
    %p128 = scmp.eq.s32.totalorder %s25, 0
    %p129 = por %p127, %p128
    %p130 = scmp.ne.s32.totalorder %s122, %s124
    %p131 = scmp.eq.s32.totalorder %s30, 3
    %p132 = por %p130, %p131
    %p133 = scmp.ne.s32.totalorder %s124, %s125
    %p134 = scmp.eq.s32.totalorder %s30, 0
    %p135 = por %p133, %p134
    %p136 = scmp.ne.s32.totalorder %s124, %s125
    %p137 = scmp.eq.s32.totalorder %s31, 3
    %p138 = por %p136, %p137
    %p140 = scmp.ne.s32.totalorder %s125, %s139
    %p141 = scmp.eq.s32.totalorder %s31, 0
    %p142 = por %p140, %p141
    %s144 = sadd.s32 %s143, 1
    %p147 = scmp.eq.s32.totalorder %s25, 3
    %p148 = scmp.ne.s32.totalorder %s143, %s145
    %p149 = scmp.eq.s32.totalorder %s25, 0
    %p150 = por %p148, %p149
    %p151 = scmp.ne.s32.totalorder %s143, %s145
    %p152 = scmp.eq.s32.totalorder %s30, 3
    %p153 = por %p151, %p152
    %p154 = scmp.ne.s32.totalorder %s145, %s146
    %p155 = scmp.eq.s32.totalorder %s30, 0
    %p156 = por %p154, %p155
    %p157 = scmp.ne.s32.totalorder %s145, %s146
    %p158 = scmp.eq.s32.totalorder %s31, 3
    %p159 = por %p157, %p158
    %p161 = scmp.ne.s32.totalorder %s146, %s160
    %p162 = scmp.eq.s32.totalorder %s31, 0
    %p163 = por %p161, %p162
    %s165 = sadd.s32 %s164, 1
    %p168 = scmp.eq.s32.totalorder %s25, 3
    %p169 = scmp.ne.s32.totalorder %s164, %s166
    %p170 = scmp.eq.s32.totalorder %s25, 0
    %p171 = por %p169, %p170
    %p172 = scmp.ne.s32.totalorder %s164, %s166
    %p173 = scmp.eq.s32.totalorder %s30, 3
    %p174 = por %p172, %p173
    %p175 = scmp.ne.s32.totalorder %s166, %s167
    %p176 = scmp.eq.s32.totalorder %s30, 0
    %p177 = por %p175, %p176
    %p178 = scmp.ne.s32.totalorder %s166, %s167
    %p179 = scmp.eq.s32.totalorder %s31, 3
    %p180 = por %p178, %p179
    %p182 = scmp.ne.s32.totalorder %s167, %s181
    %p183 = scmp.eq.s32.totalorder %s31, 0
    %p184 = por %p182, %p183
    %s186 = sadd.s32 %s185, 1
    %p189 = scmp.eq.s32.totalorder %s25, 3
    %p190 = scmp.ne.s32.totalorder %s185, %s187
    %p191 = scmp.eq.s32.totalorder %s25, 0
    %p192 = por %p190, %p191
    %p193 = scmp.ne.s32.totalorder %s185, %s187
    %p194 = scmp.eq.s32.totalorder %s30, 3
    %p195 = por %p193, %p194
    %p196 = scmp.ne.s32.totalorder %s187, %s188
    %p197 = scmp.eq.s32.totalorder %s30, 0
    %p198 = por %p196, %p197
    %p199 = scmp.ne.s32.totalorder %s187, %s188
    %p200 = scmp.eq.s32.totalorder %s31, 3
    %p201 = por %p199, %p200
    %p203 = scmp.ne.s32.totalorder %s188, %s202
    %p204 = scmp.eq.s32.totalorder %s31, 0
    %p205 = por %p203, %p204
    %s207 = sadd.s32 %s206, 1
    %p210 = scmp.eq.s32.totalorder %s25, 3
    %p211 = scmp.ne.s32.totalorder %s206, %s208
    %p212 = scmp.eq.s32.totalorder %s25, 0
    %p213 = por %p211, %p212
    %p214 = scmp.ne.s32.totalorder %s206, %s208
    %p215 = scmp.eq.s32.totalorder %s30, 3
    %p216 = por %p214, %p215
    %p217 = scmp.ne.s32.totalorder %s208, %s209
    %p218 = scmp.eq.s32.totalorder %s30, 0
    %p219 = por %p217, %p218
    %p220 = scmp.ne.s32.totalorder %s208, %s209
    %p221 = scmp.eq.s32.totalorder %s31, 3
    %p222 = por %p220, %p221
    %p224 = scmp.ne.s32.totalorder %s209, %s223
    %p225 = scmp.eq.s32.totalorder %s31, 0
    %p226 = por %p224, %p225
    %s228 = sadd.s32 %s227, 1
    %p231 = scmp.eq.s32.totalorder %s25, 3
    %p232 = scmp.ne.s32.totalorder %s227, %s229
    %p233 = scmp.eq.s32.totalorder %s25, 0
    %p234 = por %p232, %p233
    %p235 = scmp.ne.s32.totalorder %s227, %s229
    %p236 = scmp.eq.s32.totalorder %s30, 3
    %p237 = por %p235, %p236
    %p238 = scmp.ne.s32.totalorder %s229, %s230
    %p239 = scmp.eq.s32.totalorder %s30, 0
    %p240 = por %p238, %p239
    %p241 = scmp.ne.s32.totalorder %s229, %s230
    %p242 = scmp.eq.s32.totalorder %s31, 3
    %p243 = por %p241, %p242
    %p245 = scmp.ne.s32.totalorder %s230, %s244
    %p246 = scmp.eq.s32.totalorder %s31, 0
    %p247 = por %p245, %p246
    %s249 = sadd.s32 %s248, 1
    %p252 = scmp.eq.s32.totalorder %s25, 3
    %p253 = scmp.ne.s32.totalorder %s248, %s250
    %p254 = scmp.eq.s32.totalorder %s25, 0
    %p255 = por %p253, %p254
    %p256 = scmp.ne.s32.totalorder %s248, %s250
    %p257 = scmp.eq.s32.totalorder %s30, 3
    %p258 = por %p256, %p257
    %p259 = scmp.ne.s32.totalorder %s250, %s251
    %p260 = scmp.eq.s32.totalorder %s30, 0
    %p261 = por %p259, %p260
    %p262 = scmp.ne.s32.totalorder %s250, %s251
    %p263 = scmp.eq.s32.totalorder %s31, 3
    %p264 = por %p262, %p263
    %p266 = scmp.ne.s32.totalorder %s251, %s265
    %p267 = scmp.eq.s32.totalorder %s31, 0
    %p268 = por %p266, %p267
    %s270 = sadd.s32 %s269, 1
    %p273 = scmp.eq.s32.totalorder %s25, 3
    %p274 = scmp.ne.s32.totalorder %s269, %s271
    %p275 = scmp.eq.s32.totalorder %s25, 0
    %p276 = por %p274, %p275
    %p277 = scmp.ne.s32.totalorder %s269, %s271
    %p278 = scmp.eq.s32.totalorder %s30, 3
    %p279 = por %p277, %p278
    %p280 = scmp.ne.s32.totalorder %s271, %s272
    %p281 = scmp.eq.s32.totalorder %s30, 0
    %p282 = por %p280, %p281
    %p283 = scmp.ne.s32.totalorder %s271, %s272
    %p284 = scmp.eq.s32.totalorder %s31, 3
    %p285 = por %p283, %p284
    %p287 = scmp.ne.s32.totalorder %s272, %s286
    %p288 = scmp.eq.s32.totalorder %s31, 0
    %p289 = por %p287, %p288
    %s291 = sadd.s32 %s290, 1
    %p294 = scmp.eq.s32.totalorder %s25, 3
    %p295 = scmp.ne.s32.totalorder %s290, %s292
    %p296 = scmp.eq.s32.totalorder %s25, 0
    %p297 = por %p295, %p296
    %p298 = scmp.ne.s32.totalorder %s290, %s292
    %p299 = scmp.eq.s32.totalorder %s30, 3
    %p300 = por %p298, %p299
    %p301 = scmp.ne.s32.totalorder %s292, %s293
    %p302 = scmp.eq.s32.totalorder %s30, 0
    %p303 = por %p301, %p302
    %p304 = scmp.ne.s32.totalorder %s292, %s293
    %p305 = scmp.eq.s32.totalorder %s31, 3
    %p306 = por %p304, %p305
    %p308 = scmp.ne.s32.totalorder %s293, %s307
    %p309 = scmp.eq.s32.totalorder %s31, 0
    %p310 = por %p308, %p309
    %s312 = sadd.s32 %s311, 1
    %p315 = scmp.eq.s32.totalorder %s25, 3
    %p316 = scmp.ne.s32.totalorder %s311, %s313
    %p317 = scmp.eq.s32.totalorder %s25, 0
    %p318 = por %p316, %p317
    %p319 = scmp.ne.s32.totalorder %s311, %s313
    %p320 = scmp.eq.s32.totalorder %s30, 3
    %p321 = por %p319, %p320
    %p322 = scmp.ne.s32.totalorder %s313, %s314
    %p323 = scmp.eq.s32.totalorder %s30, 0
    %p324 = por %p322, %p323
    %p325 = scmp.ne.s32.totalorder %s313, %s314
    %p326 = scmp.eq.s32.totalorder %s31, 3
    %p327 = por %p325, %p326
    %p329 = scmp.ne.s32.totalorder %s314, %s328
    %p330 = scmp.eq.s32.totalorder %s31, 0
    %p331 = por %p329, %p330
    %s333 = sadd.s32 %s332, 1
    %p336 = scmp.eq.s32.totalorder %s25, 3
    %p337 = scmp.ne.s32.totalorder %s332, %s334
    %p338 = scmp.eq.s32.totalorder %s25, 0
    %p339 = por %p337, %p338
    %p340 = scmp.ne.s32.totalorder %s332, %s334
    %p341 = scmp.eq.s32.totalorder %s30, 3
    %p342 = por %p340, %p341
    %p343 = scmp.ne.s32.totalorder %s334, %s335
    %p344 = scmp.eq.s32.totalorder %s30, 0
    %p345 = por %p343, %p344
    %p346 = scmp.ne.s32.totalorder %s334, %s335
    %p347 = scmp.eq.s32.totalorder %s31, 3
    %p348 = por %p346, %p347
    %p350 = scmp.ne.s32.totalorder %s335, %s349
    %p351 = scmp.eq.s32.totalorder %s31, 0
    %p352 = por %p350, %p351
    %s354 = sadd.s32 %s353, 1
    %p357 = scmp.eq.s32.totalorder %s25, 3
    %p358 = scmp.ne.s32.totalorder %s353, %s355
    %p359 = scmp.eq.s32.totalorder %s25, 0
    %p360 = por %p358, %p359
    %p361 = scmp.ne.s32.totalorder %s353, %s355
    %p362 = scmp.eq.s32.totalorder %s30, 3
    %p363 = por %p361, %p362
    %p364 = scmp.ne.s32.totalorder %s355, %s356
    %p365 = scmp.eq.s32.totalorder %s30, 0
    %p366 = por %p364, %p365
    %p367 = scmp.ne.s32.totalorder %s355, %s356
    %p368 = scmp.eq.s32.totalorder %s31, 3
    %p369 = por %p367, %p368
    %p371 = scmp.ne.s32.totalorder %s356, %s370
    %p372 = scmp.eq.s32.totalorder %s31, 0
    %p373 = por %p371, %p372
    %s375 = sadd.s32 %s374, 1
    %p378 = scmp.eq.s32.totalorder %s25, 3
    %p379 = scmp.ne.s32.totalorder %s374, %s376
    %p380 = scmp.eq.s32.totalorder %s25, 0
    %p381 = por %p379, %p380
    %p382 = scmp.ne.s32.totalorder %s374, %s376
    %p383 = scmp.eq.s32.totalorder %s30, 3
    %p384 = por %p382, %p383
    %p385 = scmp.ne.s32.totalorder %s376, %s377
    %p386 = scmp.eq.s32.totalorder %s30, 0
    %p387 = por %p385, %p386
    %p388 = scmp.ne.s32.totalorder %s376, %s377
    %p389 = scmp.eq.s32.totalorder %s31, 3
    %p390 = por %p388, %p389
    %p392 = scmp.ne.s32.totalorder %s377, %s391
    %p393 = scmp.eq.s32.totalorder %s31, 0
    %p394 = por %p392, %p393
    %s395 = ssub.s32 %s25, %s32
    %p396 = scmp.eq.s32.totalorder %s395, 0
    %s398 = sadd.s32 %s397, 1
    %s399 = scalar_select %p396, %s397, %s398
    %p402 = pneg %p396
    %p403 = scmp.eq.s32.totalorder %s25, 3
    %p404 = por %p402, %p403
    %p405 = scmp.ne.s32.totalorder %s397, %s400
    %p406 = scmp.eq.s32.totalorder %s25, 0
    %p407 = por %p405, %p406
    %p408 = scmp.ne.s32.totalorder %s397, %s400
    %p409 = scmp.eq.s32.totalorder %s30, 3
    %p410 = por %p408, %p409
    %p411 = scmp.ne.s32.totalorder %s400, %s401
    %p412 = scmp.eq.s32.totalorder %s30, 0
    %p413 = por %p411, %p412
    %p414 = scmp.ne.s32.totalorder %s400, %s401
    %p415 = scmp.eq.s32.totalorder %s31, 3
    %p416 = por %p414, %p415
    %p418 = scmp.ne.s32.totalorder %s401, %s417
    %p419 = scmp.eq.s32.totalorder %s31, 0
    %p420 = por %p418, %p419
    %s421 = ssub.s32 %s25, %s32
    %p422 = scmp.eq.s32.totalorder %s421, 0
    %s424 = sadd.s32 %s423, 1
    %s425 = scalar_select %p422, %s423, %s424
    %p428 = pneg %p422
    %p429 = scmp.eq.s32.totalorder %s25, 3
    %p430 = por %p428, %p429
    %p431 = scmp.ne.s32.totalorder %s423, %s426
    %p432 = scmp.eq.s32.totalorder %s25, 0
    %p433 = por %p431, %p432
    %p434 = scmp.ne.s32.totalorder %s423, %s426
    %p435 = scmp.eq.s32.totalorder %s30, 3
    %p436 = por %p434, %p435
    %p437 = scmp.ne.s32.totalorder %s426, %s427
    %p438 = scmp.eq.s32.totalorder %s30, 0
    %p439 = por %p437, %p438
    %p440 = scmp.ne.s32.totalorder %s426, %s427
    %p441 = scmp.eq.s32.totalorder %s31, 3
    %p442 = por %p440, %p441
    %p444 = scmp.ne.s32.totalorder %s427, %s443
    %p445 = scmp.eq.s32.totalorder %s31, 0
    %p446 = por %p444, %p445
    %p447 = scmp.le.s32.totalorder 1, %s25
    %p448 = scmp.lt.s32.totalorder %s25, 5
    %p449 = pnand %p447, %p448
    %p450 = pneg %p449
    // Predicated region
    $region9: #{autoencoder_forward.1} parent=5 // pred_check
      _
    $region10: #{autoencoder_forward.1} parent=5 // pred_check_branch
      %452 = sbr.rel (%p449) target = $region12
    $region11: #{autoencoder_forward.1} parent=5 // pred_region
      %s453 = ssub.s32 %s25, 1
      // Predicated region
      $region13: #{autoencoder_forward.1} parent=11 // pred_check
        %p454 = pneg %p72
      $region14: #{autoencoder_forward.1} parent=11 // pred_check_branch
        %456 = sbr.rel (%p454) target = $region16
      $region15: #{autoencoder_forward.1} parent=11 // pred_region
        _
      $region16: #{autoencoder_forward.1} parent=11 // pred_fallthru
        _
      // Predicated region
      $region17: #{autoencoder_forward.1} parent=11 // pred_check
        %p457 = pneg %p93
      $region18: #{autoencoder_forward.1} parent=11 // pred_check_branch
        %459 = sbr.rel (%p457) target = $region20
      $region19: #{autoencoder_forward.1} parent=11 // pred_region
        _
      $region20: #{autoencoder_forward.1} parent=11 // pred_fallthru
        _
      // Predicated region
      $region21: #{autoencoder_forward.1} parent=11 // pred_check
        %p460 = pneg %p114
      $region22: #{autoencoder_forward.1} parent=11 // pred_check_branch
        %462 = sbr.rel (%p460) target = $region24
      $region23: #{autoencoder_forward.1} parent=11 // pred_region
        _
      $region24: #{autoencoder_forward.1} parent=11 // pred_fallthru
        _
      // Predicated region
      $region25: #{autoencoder_forward.1} parent=11 // pred_check
        %p463 = pneg %p135
      $region26: #{autoencoder_forward.1} parent=11 // pred_check_branch
        %465 = sbr.rel (%p463) target = $region28
      $region27: #{autoencoder_forward.1} parent=11 // pred_region
        _
      $region28: #{autoencoder_forward.1} parent=11 // pred_fallthru
        _
      // Predicated region
      $region29: #{autoencoder_forward.1} parent=11 // pred_check
        %p466 = pneg %p156
      $region30: #{autoencoder_forward.1} parent=11 // pred_check_branch
        %468 = sbr.rel (%p466) target = $region32
      $region31: #{autoencoder_forward.1} parent=11 // pred_region
        _
      $region32: #{autoencoder_forward.1} parent=11 // pred_fallthru
        _
      // Predicated region
      $region33: #{autoencoder_forward.1} parent=11 // pred_check
        %p469 = pneg %p177
      $region34: #{autoencoder_forward.1} parent=11 // pred_check_branch
        %471 = sbr.rel (%p469) target = $region36
      $region35: #{autoencoder_forward.1} parent=11 // pred_region
        _
      $region36: #{autoencoder_forward.1} parent=11 // pred_fallthru
        _
      // Predicated region
      $region37: #{autoencoder_forward.1} parent=11 // pred_check
        %p472 = pneg %p198
      $region38: #{autoencoder_forward.1} parent=11 // pred_check_branch
        %474 = sbr.rel (%p472) target = $region40
      $region39: #{autoencoder_forward.1} parent=11 // pred_region
        _
      $region40: #{autoencoder_forward.1} parent=11 // pred_fallthru
        _
      // Predicated region
      $region41: #{autoencoder_forward.1} parent=11 // pred_check
        %p475 = pneg %p219
      $region42: #{autoencoder_forward.1} parent=11 // pred_check_branch
        %477 = sbr.rel (%p475) target = $region44
      $region43: #{autoencoder_forward.1} parent=11 // pred_region
        _
      $region44: #{autoencoder_forward.1} parent=11 // pred_fallthru
        _
      // Predicated region
      $region45: #{autoencoder_forward.1} parent=11 // pred_check
        %p478 = pneg %p240
      $region46: #{autoencoder_forward.1} parent=11 // pred_check_branch
        %480 = sbr.rel (%p478) target = $region48
      $region47: #{autoencoder_forward.1} parent=11 // pred_region
        _
      $region48: #{autoencoder_forward.1} parent=11 // pred_fallthru
        _
      // Predicated region
      $region49: #{autoencoder_forward.1} parent=11 // pred_check
        %p481 = pneg %p261
      $region50: #{autoencoder_forward.1} parent=11 // pred_check_branch
        %483 = sbr.rel (%p481) target = $region52
      $region51: #{autoencoder_forward.1} parent=11 // pred_region
        _
      $region52: #{autoencoder_forward.1} parent=11 // pred_fallthru
        _
      // Predicated region
      $region53: #{autoencoder_forward.1} parent=11 // pred_check
        %p484 = pneg %p282
      $region54: #{autoencoder_forward.1} parent=11 // pred_check_branch
        %486 = sbr.rel (%p484) target = $region56
      $region55: #{autoencoder_forward.1} parent=11 // pred_region
        _
      $region56: #{autoencoder_forward.1} parent=11 // pred_fallthru
        _
      // Predicated region
      $region57: #{autoencoder_forward.1} parent=11 // pred_check
        %p487 = pneg %p303
      $region58: #{autoencoder_forward.1} parent=11 // pred_check_branch
        %489 = sbr.rel (%p487) target = $region60
      $region59: #{autoencoder_forward.1} parent=11 // pred_region
        _
      $region60: #{autoencoder_forward.1} parent=11 // pred_fallthru
        _
      // Predicated region
      $region61: #{autoencoder_forward.1} parent=11 // pred_check
        %p490 = pneg %p324
      $region62: #{autoencoder_forward.1} parent=11 // pred_check_branch
        %492 = sbr.rel (%p490) target = $region64
      $region63: #{autoencoder_forward.1} parent=11 // pred_region
        _
      $region64: #{autoencoder_forward.1} parent=11 // pred_fallthru
        _
      // Predicated region
      $region65: #{autoencoder_forward.1} parent=11 // pred_check
        %p493 = pneg %p345
      $region66: #{autoencoder_forward.1} parent=11 // pred_check_branch
        %495 = sbr.rel (%p493) target = $region68
      $region67: #{autoencoder_forward.1} parent=11 // pred_region
        _
      $region68: #{autoencoder_forward.1} parent=11 // pred_fallthru
        _
      // Predicated region
      $region69: #{autoencoder_forward.1} parent=11 // pred_check
        %p496 = pneg %p366
      $region70: #{autoencoder_forward.1} parent=11 // pred_check_branch
        %498 = sbr.rel (%p496) target = $region72
      $region71: #{autoencoder_forward.1} parent=11 // pred_region
        _
      $region72: #{autoencoder_forward.1} parent=11 // pred_fallthru
        _
      // Predicated region
      $region73: #{autoencoder_forward.1} parent=11 // pred_check
        %p499 = pneg %p387
      $region74: #{autoencoder_forward.1} parent=11 // pred_check_branch
        %501 = sbr.rel (%p499) target = $region76
      $region75: #{autoencoder_forward.1} parent=11 // pred_region
        _
      $region76: #{autoencoder_forward.1} parent=11 // pred_fallthru
        _
    $region12: #{autoencoder_forward.1} parent=5 // pred_fallthru
      _
    %p502 = scmp.lt.s32.totalorder %s25, 4
    // Predicated region
    $region77: #{autoencoder_forward.1} parent=5 // pred_check
      %p503 = pneg %p502
    $region78: #{autoencoder_forward.1} parent=5 // pred_check_branch
      %505 = sbr.rel (%p503) target = $region80
    $region79: #{autoencoder_forward.1} parent=5 // pred_region
      // Predicated region
      $region81: #{autoencoder_forward.1} parent=79 // pred_check
        %p506 = pneg %p45
      $region82: #{autoencoder_forward.1} parent=79 // pred_check_branch
        %508 = sbr.rel (%p506) target = $region84
      $region83: #{autoencoder_forward.1} parent=79 // pred_region
        %s509 = smul.u32 8, %s25
        %p510 = scmp.lt.s32.totalorder %s509, 31
        %s511 = scalar_select %p510, %s509, 31
        %s512 = smul.addr %s511, 7
        %s513 = smul.addr %s512, 4
        %s514 = scalar_lea.vmem %s0, %s513
        %s515 = smul.u32 8, %s25
      $region84: #{autoencoder_forward.1} parent=79 // pred_fallthru
        _
    $region80: #{autoencoder_forward.1} parent=5 // pred_fallthru
      _
    %p516 = scmp.le.s32.totalorder 1, %s25
    %p517 = scmp.lt.s32.totalorder %s25, 5
    %p518 = pnand %p516, %p517
    %p519 = pneg %p518
    // Predicated region
    $region85: #{autoencoder_forward.1} parent=5 // pred_check
      _
    $region86: #{autoencoder_forward.1} parent=5 // pred_check_branch
      %521 = sbr.rel (%p518) target = $region88
    $region87: #{autoencoder_forward.1} parent=5 // pred_region
      %s522 = ssub.s32 %s25, 1
      %s523 = smul.u32 8, %s30
      %p524 = scmp.lt.s32.totalorder %s523, 31
      %s525 = scalar_select %p524, %s523, 31
      %s526 = smul.addr %s525, 7
      %s527 = smul.addr %s526, 4
      %s528 = scalar_lea.vmem %s0, %s527
      %p529 = pneg %p51
      %p530 = pneg %p48
      %p531 = pneg %p72
      %p532 = pneg %p69
      %p533 = pneg %p93
      %p534 = pneg %p90
      %p535 = pneg %p114
      %p536 = pneg %p111
      %p537 = pneg %p135
      %p538 = pneg %p132
      %p539 = pneg %p156
      %p540 = pneg %p153
      %p541 = pneg %p177
      %p542 = pneg %p174
      %p543 = pneg %p198
      %p544 = pneg %p195
      %p545 = pneg %p219
      %p546 = pneg %p216
      %p547 = pneg %p240
      %p548 = pneg %p237
      %p549 = pneg %p261
      %p550 = pneg %p258
      %p551 = pneg %p282
      %p552 = pneg %p279
      %p553 = pneg %p303
      %p554 = pneg %p300
      %p555 = pneg %p324
      %p556 = pneg %p321
      %p557 = pneg %p345
      %p558 = pneg %p342
      %p559 = pneg %p366
      %p560 = pneg %p363
      %p561 = pneg %p387
      %p562 = pneg %p384
      %p563 = pneg %p413
      %p564 = pneg %p410
      %s565 = smul.u32 8, %s30
      %p566 = scmp.lt.s32.totalorder %s565, 31
      %s567 = scalar_select %p566, %s565, 31
      %s568 = smul.addr %s567, 8
      %s569 = scalar_lea.vmem %s17, %s568
      %p570 = pneg %p439
      %p571 = pneg %p436
      %s572 = smul.u32 8, %s30
      %p573 = scmp.lt.s32.totalorder %s572, 31
      %s574 = scalar_select %p573, %s572, 31
      %s575 = smul.addr %s574, 7
      %s576 = smul.addr %s575, 8
      %s577 = scalar_lea.vmem %s18, %s576
      %s578 = smul.u32 8, %s30
      %p579 = scmp.lt.s32.totalorder %s578, 31
      %s580 = scalar_select %p579, %s578, 31
      %s581 = smul.addr %s580, 7
      %s582 = smul.addr %s581, 4
      %s583 = scalar_lea.vmem %s0, %s582
      %s584 = smul.u32 8, %s30
      %s585 = smul.u32 8, %s30
      %p586 = scmp.lt.s32.totalorder %s585, 31
      %s587 = scalar_select %p586, %s585, 31
      %s588 = smul.addr %s587, 8
      %s589 = scalar_lea.vmem %s17, %s588
      %s590 = smul.u32 8, %s30
      %s591 = smul.u32 8, %s30
      %p592 = scmp.lt.s32.totalorder %s591, 31
      %s593 = scalar_select %p592, %s591, 31
      %s594 = smul.addr %s593, 7
      %s595 = smul.addr %s594, 8
      %s596 = scalar_lea.vmem %s18, %s595
      %s597 = smul.u32 8, %s30
      %v599 = vld [vmem:[%s583] sm:$0xff]
      %v600 = vld [vmem:[%s583 + $0x8] sm:$0xff]
      %v601 = vld [vmem:[%s583 + $0x10] sm:$0xff]
      %v602 = vld [vmem:[%s583 + $0x18] sm:$0xf]
      %v603 = vld [vmem:[%s583 + $0x1c] sm:$0xff]
      %v604 = vld [vmem:[%s583 + $0x24] sm:$0xff]
      %v605 = vld [vmem:[%s583 + $0x2c] sm:$0xff]
      %v606 = vld [vmem:[%s583 + $0x34] sm:$0xf]
      %v607 = vld [vmem:[%s583 + $0x38] sm:$0xff]
      %v608 = vld [vmem:[%s583 + $0x40] sm:$0xff]
      %v609 = vld [vmem:[%s583 + $0x48] sm:$0xff]
      %v610 = vld [vmem:[%s583 + $0x50] sm:$0xf]
      %v611 = vld [vmem:[%s583 + $0x54] sm:$0xff]
      %v612 = vld [vmem:[%s583 + $0x5c] sm:$0xff]
      %v613 = vld [vmem:[%s583 + $0x64] sm:$0xff]
      %v614 = vld [vmem:[%s583 + $0x6c] sm:$0xf]
      %v615 = vld [vmem:[%s583 + $0x70] sm:$0xff]
      %v616 = vld [vmem:[%s583 + $0x78] sm:$0xff]
      %v617 = vld [vmem:[%s583 + $0x80] sm:$0xff]
      %v618 = vld [vmem:[%s583 + $0x88] sm:$0xf]
      %v619 = vld [vmem:[%s583 + $0x8c] sm:$0xff]
      %v620 = vld [vmem:[%s583 + $0x94] sm:$0xff]
      %v621 = vld [vmem:[%s583 + $0x9c] sm:$0xff]
      %v622 = vld [vmem:[%s583 + $0xa4] sm:$0xf]
      %v623 = vld [vmem:[%s583 + $0xa8] sm:$0xff]
      %v624 = vld [vmem:[%s583 + $0xb0] sm:$0xff]
      %v625 = vld [vmem:[%s583 + $0xb8] sm:$0xff]
      %v626 = vld [vmem:[%s583 + $0xc0] sm:$0xf]
      %v627 = vld [vmem:[%s583 + $0xc4] sm:$0xff]
      %v628 = vld [vmem:[%s583 + $0xcc] sm:$0xff]
      %v629 = vld [vmem:[%s583 + $0xd4] sm:$0xff]
      %v630 = vld [vmem:[%s583 + $0xdc] sm:$0xf]
      %v631 = vld [vmem:[%s1] sm:$0xf]
      %v632 = vld [vmem:[%s1 + $0x4] sm:$0xf]
      %v633 = vld [vmem:[%s1 + $0x8] sm:$0xf]
      %v634 = vld [vmem:[%s1 + $0xc] sm:$0xf]
      %v635 = vld [vmem:[%s1 + $0x10] sm:$0xf]
      %v636 = vld [vmem:[%s1 + $0x14] sm:$0xf]
      %v637 = vld [vmem:[%s1 + $0x18] sm:$0xf]
      %v638 = vld [vmem:[%s1 + $0x1c] sm:$0xf]
      %v639 = vld [vmem:[%s1 + $0x20] sm:$0xf]
      %v640 = vld [vmem:[%s1 + $0x24] sm:$0xf]
      %v641 = vld [vmem:[%s1 + $0x28] sm:$0xf]
      %v642 = vld [vmem:[%s1 + $0x2c] sm:$0xf]
      %v643 = vld [vmem:[%s1 + $0x30] sm:$0xf]
      %v644 = vld [vmem:[%s1 + $0x34] sm:$0xf]
      %v645 = vld [vmem:[%s1 + $0x38] sm:$0xf]
      %v646 = vld [vmem:[%s1 + $0x3c] sm:$0xf]
      %v647 = vld [vmem:[%s1 + $0x40] sm:$0xf]
      %v648 = vld [vmem:[%s1 + $0x44] sm:$0xf]
      %v649 = vld [vmem:[%s1 + $0x48] sm:$0xf]
      %v650 = vld [vmem:[%s1 + $0x4c] sm:$0xf]
      %v651 = vld [vmem:[%s1 + $0x50] sm:$0xf]
      %v652 = vld [vmem:[%s1 + $0x54] sm:$0xf]
      %v653 = vld [vmem:[%s1 + $0x58] sm:$0xf]
      %v654 = vld [vmem:[%s1 + $0x5c] sm:$0xf]
      %v655 = vld [vmem:[%s1 + $0x60] sm:$0xf]
      %v656 = vld [vmem:[%s1 + $0x64] sm:$0xf]
      %v657 = vld [vmem:[%s1 + $0x68] sm:$0xf]
      %v658 = vld [vmem:[%s1 + $0x6c] sm:$0xf]
      %v659 = vld [vmem:[%s1 + $0x70] sm:$0xf]
      %v660 = vld [vmem:[%s1 + $0x74] sm:$0xf]
      %v661 = vld [vmem:[%s1 + $0x78] sm:$0xf]
      %v662 = vld [vmem:[%s1 + $0x7c] sm:$0xf]
      %v663 = vld [vmem:[%s1 + $0x80] sm:$0xf]
      %v664 = vld [vmem:[%s1 + $0x84] sm:$0xf]
      %v665 = vld [vmem:[%s1 + $0x88] sm:$0xf]
      %v666 = vld [vmem:[%s1 + $0x8c] sm:$0xf]
      %v667 = vld [vmem:[%s1 + $0x90] sm:$0xf]
      %v668 = vld [vmem:[%s1 + $0x94] sm:$0xf]
      %v669 = vld [vmem:[%s1 + $0x98] sm:$0xf]
      %v670 = vld [vmem:[%s1 + $0x9c] sm:$0xf]
      %v671 = vld [vmem:[%s1 + $0xa0] sm:$0xf]
      %v672 = vld [vmem:[%s1 + $0xa4] sm:$0xf]
      %v673 = vld [vmem:[%s1 + $0xa8] sm:$0xf]
      %v674 = vld [vmem:[%s1 + $0xac] sm:$0xf]
      %v675 = vld [vmem:[%s1 + $0xb0] sm:$0xf]
      %v676 = vld [vmem:[%s1 + $0xb4] sm:$0xf]
      %v677 = vld [vmem:[%s1 + $0xb8] sm:$0xf]
      %v678 = vld [vmem:[%s1 + $0xbc] sm:$0xf]
      %v679 = vld [vmem:[%s1 + $0xc0] sm:$0xf]
      %v680 = vld [vmem:[%s1 + $0xc4] sm:$0xf]
      %v681 = vld [vmem:[%s1 + $0xc8] sm:$0xf]
      %v682 = vld [vmem:[%s1 + $0xcc] sm:$0xf]
      %v683 = vld [vmem:[%s1 + $0xd0] sm:$0xf]
      %v684 = vld [vmem:[%s1 + $0xd4] sm:$0xf]
      %v685 = vld [vmem:[%s1 + $0xd8] sm:$0xf]
      %v686 = vld [vmem:[%s1 + $0xdc] sm:$0xf]
      %v687 = vld [vmem:[%s1 + $0xe0] sm:$0xf]
      %v688 = vld [vmem:[%s1 + $0xe4] sm:$0xf]
      %v689 = vld [vmem:[%s1 + $0xe8] sm:$0xf]
      %v690 = vld [vmem:[%s1 + $0xec] sm:$0xf]
      %v691 = vld [vmem:[%s1 + $0xf0] sm:$0xf]
      %v692 = vld [vmem:[%s1 + $0xf4] sm:$0xf]
      %v693 = vld [vmem:[%s1 + $0xf8] sm:$0xf]
      %v694 = vld [vmem:[%s1 + $0xfc] sm:$0xf]
      %v695 = vld [vmem:[%s1 + $0x100] sm:$0xf]
      %v696 = vld [vmem:[%s1 + $0x104] sm:$0xf]
      %v697 = vld [vmem:[%s1 + $0x108] sm:$0xf]
      %v698 = vld [vmem:[%s1 + $0x10c] sm:$0xf]
      %v699 = vld [vmem:[%s1 + $0x110] sm:$0xf]
      %v700 = vld [vmem:[%s1 + $0x114] sm:$0xf]
      %v701 = vld [vmem:[%s1 + $0x118] sm:$0xf]
      %v702 = vld [vmem:[%s1 + $0x11c] sm:$0xf]
      %v703 = vld [vmem:[%s1 + $0x120] sm:$0xf]
      %v704 = vld [vmem:[%s1 + $0x124] sm:$0xf]
      %v705 = vld [vmem:[%s1 + $0x128] sm:$0xf]
      %v706 = vld [vmem:[%s1 + $0x12c] sm:$0xf]
      %v707 = vld [vmem:[%s1 + $0x130] sm:$0xf]
      %v708 = vld [vmem:[%s1 + $0x134] sm:$0xf]
      %v709 = vld [vmem:[%s1 + $0x138] sm:$0xf]
      %v710 = vld [vmem:[%s1 + $0x13c] sm:$0xf]
      %v711 = vld [vmem:[%s1 + $0x140] sm:$0xf]
      %v712 = vld [vmem:[%s1 + $0x144] sm:$0xf]
      %v713 = vld [vmem:[%s1 + $0x148] sm:$0xf]
      %v714 = vld [vmem:[%s1 + $0x14c] sm:$0xf]
      %v715 = vld [vmem:[%s1 + $0x150] sm:$0xf]
      %v716 = vld [vmem:[%s1 + $0x154] sm:$0xf]
      %v717 = vld [vmem:[%s1 + $0x158] sm:$0xf]
      %v718 = vld [vmem:[%s1 + $0x15c] sm:$0xf]
      %v719 = vld [vmem:[%s1 + $0x160] sm:$0xf]
      %v720 = vld [vmem:[%s1 + $0x164] sm:$0xf]
      %v721 = vld [vmem:[%s1 + $0x168] sm:$0xf]
      %v722 = vld [vmem:[%s1 + $0x16c] sm:$0xf]
      %v723 = vld [vmem:[%s1 + $0x170] sm:$0xf]
      %v724 = vld [vmem:[%s1 + $0x174] sm:$0xf]
      %v725 = vld [vmem:[%s1 + $0x178] sm:$0xf]
      %v726 = vld [vmem:[%s1 + $0x17c] sm:$0xf]
      %v727 = vld [vmem:[%s1 + $0x180] sm:$0xf]
      %v728 = vld [vmem:[%s1 + $0x184] sm:$0xf]
      %v729 = vld [vmem:[%s2] sm:$0x1]
      %v731 = vlaneseq
      %v732 = vshrl.u32 %v731, 7
      %v733 = vsub.s32 0, %v732
      %v734 = vrot.slane %v729, %v733
      %v768 = vunpack.c.l.b16 %v599
      %v769 = vunpack.c.h.b16 %v599
      %v770 = vunpack.c.l.b16 %v600
      %v771 = vunpack.c.h.b16 %v600
      %v772 = vunpack.c.l.b16 %v601
      %v773 = vunpack.c.h.b16 %v601
      %v774 = vunpack.c.l.b16 %v602
      %v775 = vunpack.c.l.b16 %v603
      %v776 = vunpack.c.h.b16 %v603
      %v777 = vunpack.c.l.b16 %v604
      %v778 = vunpack.c.h.b16 %v604
      %v779 = vunpack.c.l.b16 %v605
      %v780 = vunpack.c.h.b16 %v605
      %v781 = vunpack.c.l.b16 %v606
      %v782 = vunpack.c.l.b16 %v607
      %v783 = vunpack.c.h.b16 %v607
      %v784 = vunpack.c.l.b16 %v608
      %v785 = vunpack.c.h.b16 %v608
      %v786 = vunpack.c.l.b16 %v609
      %v787 = vunpack.c.h.b16 %v609
      %v788 = vunpack.c.l.b16 %v610
      %v789 = vunpack.c.l.b16 %v611
      %v790 = vunpack.c.h.b16 %v611
      %v791 = vunpack.c.l.b16 %v612
      %v792 = vunpack.c.h.b16 %v612
      %v793 = vunpack.c.l.b16 %v613
      %v794 = vunpack.c.h.b16 %v613
      %v795 = vunpack.c.l.b16 %v614
      %v796 = vunpack.c.l.b16 %v615
      %v797 = vunpack.c.h.b16 %v615
      %v798 = vunpack.c.l.b16 %v616
      %v799 = vunpack.c.h.b16 %v616
      %v800 = vunpack.c.l.b16 %v617
      %v801 = vunpack.c.h.b16 %v617
      %v802 = vunpack.c.l.b16 %v618
      %v803 = vunpack.c.l.b16 %v619
      %v804 = vunpack.c.h.b16 %v619
      %v805 = vunpack.c.l.b16 %v620
      %v806 = vunpack.c.h.b16 %v620
      %v807 = vunpack.c.l.b16 %v621
      %v808 = vunpack.c.h.b16 %v621
      %v809 = vunpack.c.l.b16 %v622
      %v810 = vunpack.c.l.b16 %v623
      %v811 = vunpack.c.h.b16 %v623
      %v812 = vunpack.c.l.b16 %v624
      %v813 = vunpack.c.h.b16 %v624
      %v814 = vunpack.c.l.b16 %v625
      %v815 = vunpack.c.h.b16 %v625
      %v816 = vunpack.c.l.b16 %v626
      %v817 = vunpack.c.l.b16 %v627
      %v818 = vunpack.c.h.b16 %v627
      %v819 = vunpack.c.l.b16 %v628
      %v820 = vunpack.c.h.b16 %v628
      %v821 = vunpack.c.l.b16 %v629
      %v822 = vunpack.c.h.b16 %v629
      %v823 = vunpack.c.l.b16 %v630
      %v824 = vpack.c.b16 %v775, %v768
      %v825 = vpack.c.b16 %v776, %v769
      %v826 = vpack.c.b16 %v777, %v770
      %v827 = vpack.c.b16 %v778, %v771
      %v828 = vpack.c.b16 %v779, %v772
      %v829 = vpack.c.b16 %v780, %v773
      %v830 = vpack.c.b16 %v781, %v774
      %v831 = vpack.c.b16 %v789, %v782
      %v832 = vpack.c.b16 %v790, %v783
      %v833 = vpack.c.b16 %v791, %v784
      %v834 = vpack.c.b16 %v792, %v785
      %v835 = vpack.c.b16 %v793, %v786
      %v836 = vpack.c.b16 %v794, %v787
      %v837 = vpack.c.b16 %v795, %v788
      %v838 = vpack.c.b16 %v803, %v796
      %v839 = vpack.c.b16 %v804, %v797
      %v840 = vpack.c.b16 %v805, %v798
      %v841 = vpack.c.b16 %v806, %v799
      %v842 = vpack.c.b16 %v807, %v800
      %v843 = vpack.c.b16 %v808, %v801
      %v844 = vpack.c.b16 %v809, %v802
      %v845 = vpack.c.b16 %v817, %v810
      %v846 = vpack.c.b16 %v818, %v811
      %v847 = vpack.c.b16 %v819, %v812
      %v848 = vpack.c.b16 %v820, %v813
      %v849 = vpack.c.b16 %v821, %v814
      %v850 = vpack.c.b16 %v822, %v815
      %v851 = vpack.c.b16 %v823, %v816
      %v974 = vunpack.c.l.b16 %v631
      %v975 = vunpack.c.l.b16 %v632
      %v976 = vunpack.c.l.b16 %v633
      %v977 = vunpack.c.l.b16 %v634
      %v978 = vunpack.c.l.b16 %v635
      %v979 = vunpack.c.l.b16 %v636
      %v980 = vunpack.c.l.b16 %v637
      %v981 = vunpack.c.l.b16 %v638
      %v982 = vunpack.c.l.b16 %v639
      %v983 = vunpack.c.l.b16 %v640
      %v984 = vunpack.c.l.b16 %v641
      %v985 = vunpack.c.l.b16 %v642
      %v986 = vunpack.c.l.b16 %v643
      %v987 = vunpack.c.l.b16 %v644
      %v988 = vunpack.c.l.b16 %v645
      %v989 = vunpack.c.l.b16 %v646
      %v990 = vunpack.c.l.b16 %v647
      %v991 = vunpack.c.l.b16 %v648
      %v992 = vunpack.c.l.b16 %v649
      %v993 = vunpack.c.l.b16 %v650
      %v994 = vunpack.c.l.b16 %v651
      %v995 = vunpack.c.l.b16 %v652
      %v996 = vunpack.c.l.b16 %v653
      %v997 = vunpack.c.l.b16 %v654
      %v998 = vunpack.c.l.b16 %v655
      %v999 = vunpack.c.l.b16 %v656
      %v1000 = vunpack.c.l.b16 %v657
      %v1001 = vunpack.c.l.b16 %v658
      %v1002 = vunpack.c.l.b16 %v659
      %v1003 = vunpack.c.l.b16 %v660
      %v1004 = vunpack.c.l.b16 %v661
      %v1005 = vunpack.c.l.b16 %v662
      %v1006 = vunpack.c.l.b16 %v663
      %v1007 = vunpack.c.l.b16 %v664
      %v1008 = vunpack.c.l.b16 %v665
      %v1009 = vunpack.c.l.b16 %v666
      %v1010 = vunpack.c.l.b16 %v667
      %v1011 = vunpack.c.l.b16 %v668
      %v1012 = vunpack.c.l.b16 %v669
      %v1013 = vunpack.c.l.b16 %v670
      %v1014 = vunpack.c.l.b16 %v671
      %v1015 = vunpack.c.l.b16 %v672
      %v1016 = vunpack.c.l.b16 %v673
      %v1017 = vunpack.c.l.b16 %v674
      %v1018 = vunpack.c.l.b16 %v675
      %v1019 = vunpack.c.l.b16 %v676
      %v1020 = vunpack.c.l.b16 %v677
      %v1021 = vunpack.c.l.b16 %v678
      %v1022 = vunpack.c.l.b16 %v679
      %v1023 = vunpack.c.l.b16 %v680
      %v1024 = vunpack.c.l.b16 %v681
      %v1025 = vunpack.c.l.b16 %v682
      %v1026 = vunpack.c.l.b16 %v683
      %v1027 = vunpack.c.l.b16 %v684
      %v1028 = vunpack.c.l.b16 %v685
      %v1029 = vunpack.c.l.b16 %v686
      %v1030 = vunpack.c.l.b16 %v687
      %v1031 = vunpack.c.l.b16 %v688
      %v1032 = vunpack.c.l.b16 %v689
      %v1033 = vunpack.c.l.b16 %v690
      %v1034 = vunpack.c.l.b16 %v691
      %v1035 = vunpack.c.l.b16 %v692
      %v1036 = vunpack.c.l.b16 %v693
      %v1037 = vunpack.c.l.b16 %v694
      %v1038 = vunpack.c.l.b16 %v695
      %v1039 = vunpack.c.l.b16 %v696
      %v1040 = vunpack.c.l.b16 %v697
      %v1041 = vunpack.c.l.b16 %v698
      %v1042 = vunpack.c.l.b16 %v699
      %v1043 = vunpack.c.l.b16 %v700
      %v1044 = vunpack.c.l.b16 %v701
      %v1045 = vunpack.c.l.b16 %v702
      %v1046 = vunpack.c.l.b16 %v703
      %v1047 = vunpack.c.l.b16 %v704
      %v1048 = vunpack.c.l.b16 %v705
      %v1049 = vunpack.c.l.b16 %v706
      %v1050 = vunpack.c.l.b16 %v707
      %v1051 = vunpack.c.l.b16 %v708
      %v1052 = vunpack.c.l.b16 %v709
      %v1053 = vunpack.c.l.b16 %v710
      %v1054 = vunpack.c.l.b16 %v711
      %v1055 = vunpack.c.l.b16 %v712
      %v1056 = vunpack.c.l.b16 %v713
      %v1057 = vunpack.c.l.b16 %v714
      %v1058 = vunpack.c.l.b16 %v715
      %v1059 = vunpack.c.l.b16 %v716
      %v1060 = vunpack.c.l.b16 %v717
      %v1061 = vunpack.c.l.b16 %v718
      %v1062 = vunpack.c.l.b16 %v719
      %v1063 = vunpack.c.l.b16 %v720
      %v1064 = vunpack.c.l.b16 %v721
      %v1065 = vunpack.c.l.b16 %v722
      %v1066 = vunpack.c.l.b16 %v723
      %v1067 = vunpack.c.l.b16 %v724
      %v1068 = vunpack.c.l.b16 %v725
      %v1069 = vunpack.c.l.b16 %v726
      %v1070 = vunpack.c.l.b16 %v727
      %v1071 = vunpack.c.l.b16 %v728
      %v1072 = vpack.c.b16 %v975, %v974
      %v1073 = vpack.c.b16 %v977, %v976
      %v1074 = vpack.c.b16 %v979, %v978
      %v1075 = vpack.c.b16 %v981, %v980
      %v1076 = vpack.c.b16 %v983, %v982
      %v1077 = vpack.c.b16 %v985, %v984
      %v1078 = vpack.c.b16 %v987, %v986
      %v1079 = vpack.c.b16 %v989, %v988
      %v1080 = vpack.c.b16 %v991, %v990
      %v1081 = vpack.c.b16 %v993, %v992
      %v1082 = vpack.c.b16 %v995, %v994
      %v1083 = vpack.c.b16 %v997, %v996
      %v1084 = vpack.c.b16 %v999, %v998
      %v1085 = vpack.c.b16 %v1001, %v1000
      %v1086 = vpack.c.b16 %v1003, %v1002
      %v1087 = vpack.c.b16 %v1005, %v1004
      %v1088 = vpack.c.b16 %v1007, %v1006
      %v1089 = vpack.c.b16 %v1009, %v1008
      %v1090 = vpack.c.b16 %v1011, %v1010
      %v1091 = vpack.c.b16 %v1013, %v1012
      %v1092 = vpack.c.b16 %v1015, %v1014
      %v1093 = vpack.c.b16 %v1017, %v1016
      %v1094 = vpack.c.b16 %v1019, %v1018
      %v1095 = vpack.c.b16 %v1021, %v1020
      %v1096 = vpack.c.b16 %v1023, %v1022
      %v1097 = vpack.c.b16 %v1025, %v1024
      %v1098 = vpack.c.b16 %v1027, %v1026
      %v1099 = vpack.c.b16 %v1029, %v1028
      %v1100 = vpack.c.b16 %v1031, %v1030
      %v1101 = vpack.c.b16 %v1033, %v1032
      %v1102 = vpack.c.b16 %v1035, %v1034
      %v1103 = vpack.c.b16 %v1037, %v1036
      %v1104 = vpack.c.b16 %v1039, %v1038
      %v1105 = vpack.c.b16 %v1041, %v1040
      %v1106 = vpack.c.b16 %v1043, %v1042
      %v1107 = vpack.c.b16 %v1045, %v1044
      %v1108 = vpack.c.b16 %v1047, %v1046
      %v1109 = vpack.c.b16 %v1049, %v1048
      %v1110 = vpack.c.b16 %v1051, %v1050
      %v1111 = vpack.c.b16 %v1053, %v1052
      %v1112 = vpack.c.b16 %v1055, %v1054
      %v1113 = vpack.c.b16 %v1057, %v1056
      %v1114 = vpack.c.b16 %v1059, %v1058
      %v1115 = vpack.c.b16 %v1061, %v1060
      %v1116 = vpack.c.b16 %v1063, %v1062
      %v1117 = vpack.c.b16 %v1065, %v1064
      %v1118 = vpack.c.b16 %v1067, %v1066
      %v1119 = vpack.c.b16 %v1069, %v1068
      %v1120 = vpack.c.b16 %v1071, %v1070
      %vm1170 = vcmask 130048
      %v1172 = vsel %vm1170, %v830, 0
      %v1175 = vsel %vm1170, %v837, 0
      %v1178 = vsel %vm1170, %v844, 0
      %v1181 = vsel %vm1170, %v851, 0
      %1183 = vmatprep.subr.bf16.mxu0 0
      %1184 = vmatpush1.bf16.msra.mxu0 %v1079
      %1185 = vmatprep.subr.bf16.mxu0 0
      %1186 = vmatpush1.bf16.msra.mxu0 %v1078
      %1187 = vmatprep.subr.bf16.mxu0 0
      %1188 = vmatpush1.bf16.msra.mxu0 %v1077
      %1189 = vmatprep.subr.bf16.mxu0 0
      %1190 = vmatpush1.bf16.msra.mxu0 %v1076
      %1191 = vmatprep.subr.bf16.mxu0 0
      %1192 = vmatpush1.bf16.msra.mxu0 %v1075
      %1193 = vmatprep.subr.bf16.mxu0 0
      %1194 = vmatpush1.bf16.msra.mxu0 %v1074
      %1195 = vmatprep.subr.bf16.mxu0 0
      %1196 = vmatpush1.bf16.msra.mxu0 %v1073
      %1197 = vmatprep.subr.bf16.mxu0 0
      %1198 = vmatpush1.bf16.msra.mxu0 %v1072
      %1199 = vmatprep.subr.bf16.mxu0 0
      %1200 = vmatpush2.bf16.msra.mxu0 %v1087
      %1201 = vmatprep.subr.bf16.mxu0 0
      %1202 = vmatpush2.bf16.msra.mxu0 %v1086
      %1203 = vmatprep.subr.bf16.mxu0 0
      %1204 = vmatpush2.bf16.msra.mxu0 %v1085
      %1205 = vmatprep.subr.bf16.mxu0 0
      %1206 = vmatpush2.bf16.msra.mxu0 %v1084
      %1207 = vmatprep.subr.bf16.mxu0 0
      %1208 = vmatpush2.bf16.msra.mxu0 %v1083
      %1209 = vmatprep.subr.bf16.mxu0 0
      %1210 = vmatpush2.bf16.msra.mxu0 %v1082
      %1211 = vmatprep.subr.bf16.mxu0 0
      %1212 = vmatpush2.bf16.msra.mxu0 %v1081
      %1213 = vmatprep.subr.bf16.mxu0 0
      %1214 = vmatpush2.bf16.msra.mxu0 %v1080
      %1215 = vmatprep.mubr.bf16.mxu0 %v825
      %1216 = vmatmul.mubr.bf16.gmra.mxu0 %v824
      %v1217 = vpop.f32.mrf.mxu0
      %v1218 = vadd.f32 %v734, %v1217
      %v1219 = vpop.f32.mrf.mxu0
      %v1220 = vpop.f32.mrf.mxu0
      %v1221 = vadd.f32 %v734, %v1220
      %v1222 = vpop.f32.mrf.mxu0
      %1223 = vmatprep.mubr.bf16.mxu0 %v832
      %1224 = vmatmul.mubr.bf16.gmra.mxu0 %v831
      %v1225 = vpop.f32.mrf.mxu0
      %v1226 = vadd.f32 %v734, %v1225
      %v1227 = vpop.f32.mrf.mxu0
      %v1228 = vpop.f32.mrf.mxu0
      %v1229 = vadd.f32 %v734, %v1228
      %v1230 = vpop.f32.mrf.mxu0
      %1231 = vmatprep.mubr.bf16.mxu0 %v839
      %1232 = vmatmul.mubr.bf16.gmra.mxu0 %v838
      %v1233 = vpop.f32.mrf.mxu0
      %v1234 = vadd.f32 %v734, %v1233
      %v1235 = vpop.f32.mrf.mxu0
      %v1236 = vpop.f32.mrf.mxu0
      %v1237 = vadd.f32 %v734, %v1236
      %v1238 = vpop.f32.mrf.mxu0
      %1239 = vmatprep.mubr.bf16.mxu0 %v846
      %1240 = vmatmul.mubr.bf16.gmra.mxu0 %v845
      %v1241 = vpop.f32.mrf.mxu0
      %v1242 = vadd.f32 %v734, %v1241
      %v1243 = vpop.f32.mrf.mxu0
      %v1244 = vpop.f32.mrf.mxu0
      %v1245 = vadd.f32 %v734, %v1244
      %v1246 = vpop.f32.mrf.mxu0
      %1247 = vdwg.mxu0
      %1248 = vmatprep.subr.bf16.mxu0 0
      %1249 = vmatpush1.bf16.msra.mxu0 %v1095
      %1250 = vmatprep.subr.bf16.mxu0 0
      %1251 = vmatpush1.bf16.msra.mxu0 %v1094
      %1252 = vmatprep.subr.bf16.mxu0 0
      %1253 = vmatpush1.bf16.msra.mxu0 %v1093
      %1254 = vmatprep.subr.bf16.mxu0 0
      %1255 = vmatpush1.bf16.msra.mxu0 %v1092
      %1256 = vmatprep.subr.bf16.mxu0 0
      %1257 = vmatpush1.bf16.msra.mxu0 %v1091
      %1258 = vmatprep.subr.bf16.mxu0 0
      %1259 = vmatpush1.bf16.msra.mxu0 %v1090
      %1260 = vmatprep.subr.bf16.mxu0 0
      %1261 = vmatpush1.bf16.msra.mxu0 %v1089
      %1262 = vmatprep.subr.bf16.mxu0 0
      %1263 = vmatpush1.bf16.msra.mxu0 %v1088
      %1264 = vmatprep.subr.bf16.mxu0 0
      %1265 = vmatpush2.bf16.msra.mxu0 %v1103
      %1266 = vmatprep.subr.bf16.mxu0 0
      %1267 = vmatpush2.bf16.msra.mxu0 %v1102
      %1268 = vmatprep.subr.bf16.mxu0 0
      %1269 = vmatpush2.bf16.msra.mxu0 %v1101
      %1270 = vmatprep.subr.bf16.mxu0 0
      %1271 = vmatpush2.bf16.msra.mxu0 %v1100
      %1272 = vmatprep.subr.bf16.mxu0 0
      %1273 = vmatpush2.bf16.msra.mxu0 %v1099
      %1274 = vmatprep.subr.bf16.mxu0 0
      %1275 = vmatpush2.bf16.msra.mxu0 %v1098
      %1276 = vmatprep.subr.bf16.mxu0 0
      %1277 = vmatpush2.bf16.msra.mxu0 %v1097
      %1278 = vmatprep.subr.bf16.mxu0 0
      %1279 = vmatpush2.bf16.msra.mxu0 %v1096
      %1280 = vmatprep.mubr.bf16.mxu0 %v827
      %1281 = vmatmul.mubr.bf16.gmra.mxu0 %v826
      %v1282 = vpop.f32.mrf.mxu0
      %v1283 = vadd.f32 %v1218, %v1282
      %v1284 = vpop.f32.mrf.mxu0
      %v1285 = vpop.f32.mrf.mxu0
      %v1286 = vadd.f32 %v1221, %v1285
      %v1287 = vpop.f32.mrf.mxu0
      %1288 = vmatprep.mubr.bf16.mxu0 %v834
      %1289 = vmatmul.mubr.bf16.gmra.mxu0 %v833
      %v1290 = vpop.f32.mrf.mxu0
      %v1291 = vadd.f32 %v1226, %v1290
      %v1292 = vpop.f32.mrf.mxu0
      %v1293 = vpop.f32.mrf.mxu0
      %v1294 = vadd.f32 %v1229, %v1293
      %v1295 = vpop.f32.mrf.mxu0
      %1296 = vmatprep.mubr.bf16.mxu0 %v841
      %1297 = vmatmul.mubr.bf16.gmra.mxu0 %v840
      %v1298 = vpop.f32.mrf.mxu0
      %v1299 = vadd.f32 %v1234, %v1298
      %v1300 = vpop.f32.mrf.mxu0
      %v1301 = vpop.f32.mrf.mxu0
      %v1302 = vadd.f32 %v1237, %v1301
      %v1303 = vpop.f32.mrf.mxu0
      %1304 = vmatprep.mubr.bf16.mxu0 %v848
      %1305 = vmatmul.mubr.bf16.gmra.mxu0 %v847
      %v1306 = vpop.f32.mrf.mxu0
      %v1307 = vadd.f32 %v1242, %v1306
      %v1308 = vpop.f32.mrf.mxu0
      %v1309 = vpop.f32.mrf.mxu0
      %v1310 = vadd.f32 %v1245, %v1309
      %v1311 = vpop.f32.mrf.mxu0
      %1312 = vdwg.mxu0
      %1313 = vmatprep.subr.bf16.mxu0 0
      %1314 = vmatpush1.bf16.msra.mxu0 %v1111
      %1315 = vmatprep.subr.bf16.mxu0 0
      %1316 = vmatpush1.bf16.msra.mxu0 %v1110
      %1317 = vmatprep.subr.bf16.mxu0 0
      %1318 = vmatpush1.bf16.msra.mxu0 %v1109
      %1319 = vmatprep.subr.bf16.mxu0 0
      %1320 = vmatpush1.bf16.msra.mxu0 %v1108
      %1321 = vmatprep.subr.bf16.mxu0 0
      %1322 = vmatpush1.bf16.msra.mxu0 %v1107
      %1323 = vmatprep.subr.bf16.mxu0 0
      %1324 = vmatpush1.bf16.msra.mxu0 %v1106
      %1325 = vmatprep.subr.bf16.mxu0 0
      %1326 = vmatpush1.bf16.msra.mxu0 %v1105
      %1327 = vmatprep.subr.bf16.mxu0 0
      %1328 = vmatpush1.bf16.msra.mxu0 %v1104
      %1329 = vmatprep.subr.bf16.mxu0 0
      %1330 = vmatpush2.bf16.msra.mxu0 %v1119
      %1331 = vmatprep.subr.bf16.mxu0 0
      %1332 = vmatpush2.bf16.msra.mxu0 %v1118
      %1333 = vmatprep.subr.bf16.mxu0 0
      %1334 = vmatpush2.bf16.msra.mxu0 %v1117
      %1335 = vmatprep.subr.bf16.mxu0 0
      %1336 = vmatpush2.bf16.msra.mxu0 %v1116
      %1337 = vmatprep.subr.bf16.mxu0 0
      %1338 = vmatpush2.bf16.msra.mxu0 %v1115
      %1339 = vmatprep.subr.bf16.mxu0 0
      %1340 = vmatpush2.bf16.msra.mxu0 %v1114
      %1341 = vmatprep.subr.bf16.mxu0 0
      %1342 = vmatpush2.bf16.msra.mxu0 %v1113
      %1343 = vmatprep.subr.bf16.mxu0 0
      %1344 = vmatpush2.bf16.msra.mxu0 %v1112
      %1345 = vmatprep.mubr.bf16.mxu0 %v829
      %1346 = vmatmul.mubr.bf16.gmra.mxu0 %v828
      %v1347 = vpop.f32.mrf.mxu0
      %v1348 = vadd.f32 %v1283, %v1347
      %v1349 = vpop.f32.mrf.mxu0
      %v1350 = vpop.f32.mrf.mxu0
      %v1351 = vadd.f32 %v1286, %v1350
      %v1352 = vpop.f32.mrf.mxu0
      %1353 = vmatprep.mubr.bf16.mxu0 %v836
      %1354 = vmatmul.mubr.bf16.gmra.mxu0 %v835
      %v1355 = vpop.f32.mrf.mxu0
      %v1356 = vadd.f32 %v1291, %v1355
      %v1357 = vpop.f32.mrf.mxu0
      %v1358 = vpop.f32.mrf.mxu0
      %v1359 = vadd.f32 %v1294, %v1358
      %v1360 = vpop.f32.mrf.mxu0
      %1361 = vmatprep.mubr.bf16.mxu0 %v843
      %1362 = vmatmul.mubr.bf16.gmra.mxu0 %v842
      %v1363 = vpop.f32.mrf.mxu0
      %v1364 = vadd.f32 %v1299, %v1363
      %v1365 = vpop.f32.mrf.mxu0
      %v1366 = vpop.f32.mrf.mxu0
      %v1367 = vadd.f32 %v1302, %v1366
      %v1368 = vpop.f32.mrf.mxu0
      %1369 = vmatprep.mubr.bf16.mxu0 %v850
      %1370 = vmatmul.mubr.bf16.gmra.mxu0 %v849
      %v1371 = vpop.f32.mrf.mxu0
      %v1372 = vadd.f32 %v1307, %v1371
      %v1373 = vpop.f32.mrf.mxu0
      %v1374 = vpop.f32.mrf.mxu0
      %v1375 = vadd.f32 %v1310, %v1374
      %v1376 = vpop.f32.mrf.mxu0
      %1377 = vdwg.mxu0
      %1378 = vmatprep.subr.bf16.mxu0 0
      %1379 = vmatpush1.bf16.msra.mxu0 0
      %1380 = vmatprep.subr.bf16.mxu0 0
      %1381 = vmatpush1.bf16.msra.mxu0 0
      %1382 = vmatprep.subr.bf16.mxu0 0
      %1383 = vmatpush1.bf16.msra.mxu0 0
      %1384 = vmatprep.subr.bf16.mxu0 0
      %1385 = vmatpush1.bf16.msra.mxu0 0
      %1386 = vmatprep.subr.bf16.mxu0 0
      %1387 = vmatpush1.bf16.msra.mxu0 0
      %1388 = vmatprep.subr.bf16.mxu0 0
      %1389 = vmatpush1.bf16.msra.mxu0 0
      %1390 = vmatprep.subr.bf16.mxu0 0
      %1391 = vmatpush1.bf16.msra.mxu0 0
      %1392 = vmatprep.subr.bf16.mxu0 0
      %1393 = vmatpush1.bf16.msra.mxu0 %v1120
      %1394 = vmatprep.subr.bf16.mxu0 0
      %1395 = vmatpush2.bf16.msra.mxu0 0
      %1396 = vmatprep.subr.bf16.mxu0 0
      %1397 = vmatpush2.bf16.msra.mxu0 0
      %1398 = vmatprep.subr.bf16.mxu0 0
      %1399 = vmatpush2.bf16.msra.mxu0 0
      %1400 = vmatprep.subr.bf16.mxu0 0
      %1401 = vmatpush2.bf16.msra.mxu0 0
      %1402 = vmatprep.subr.bf16.mxu0 0
      %1403 = vmatpush2.bf16.msra.mxu0 0
      %1404 = vmatprep.subr.bf16.mxu0 0
      %1405 = vmatpush2.bf16.msra.mxu0 0
      %1406 = vmatprep.subr.bf16.mxu0 0
      %1407 = vmatpush2.bf16.msra.mxu0 0
      %1408 = vmatprep.subr.bf16.mxu0 0
      %1409 = vmatpush2.bf16.msra.mxu0 0
      %1410 = vmatprep.mubr.bf16.mxu0 0
      %1411 = vmatmul.mubr.bf16.gmra.mxu0 %v1172
      %v1412 = vpop.f32.mrf.mxu0
      %v1413 = vadd.f32 %v1348, %v1412
      %v1414 = vpop.f32.mrf.mxu0
      %v1415 = vpop.f32.mrf.mxu0
      %v1416 = vadd.f32 %v1351, %v1415
      %v1417 = vpop.f32.mrf.mxu0
      %1418 = vmatprep.mubr.bf16.mxu0 0
      %1419 = vmatmul.mubr.bf16.gmra.mxu0 %v1175
      %v1420 = vpop.f32.mrf.mxu0
      %v1421 = vadd.f32 %v1356, %v1420
      %v1422 = vpop.f32.mrf.mxu0
      %v1423 = vpop.f32.mrf.mxu0
      %v1424 = vadd.f32 %v1359, %v1423
      %v1425 = vpop.f32.mrf.mxu0
      %1426 = vmatprep.mubr.bf16.mxu0 0
      %1427 = vmatmul.mubr.bf16.gmra.mxu0 %v1178
      %v1428 = vpop.f32.mrf.mxu0
      %v1429 = vadd.f32 %v1364, %v1428
      %v1430 = vpop.f32.mrf.mxu0
      %v1431 = vpop.f32.mrf.mxu0
      %v1432 = vadd.f32 %v1367, %v1431
      %v1433 = vpop.f32.mrf.mxu0
      %1434 = vmatprep.mubr.bf16.mxu0 0
      %1435 = vmatmul.mubr.bf16.gmra.mxu0 %v1181
      %v1436 = vpop.f32.mrf.mxu0
      %v1437 = vadd.f32 %v1372, %v1436
      %v1438 = vpop.f32.mrf.mxu0
      %v1439 = vpop.f32.mrf.mxu0
      %v1440 = vadd.f32 %v1375, %v1439
      %v1441 = vpop.f32.mrf.mxu0
      %1442 = vdwg.mxu0
      %v1443 = vmax.f32 %v1413, 0.0
      %v1444 = vmax.f32 %v1416, 0.0
      %v1445 = vmax.f32 %v1421, 0.0
      %v1446 = vmax.f32 %v1424, 0.0
      %v1447 = vmax.f32 %v1429, 0.0
      %v1448 = vmax.f32 %v1432, 0.0
      %v1449 = vmax.f32 %v1437, 0.0
      %v1450 = vmax.f32 %v1440, 0.0
      %v1451 = vpack.c.bf16 %v1444, %v1443
      %v1452 = vpack.c.bf16 %v1446, %v1445
      %v1453 = vpack.c.bf16 %v1448, %v1447
      %v1454 = vpack.c.bf16 %v1450, %v1449
      %v1455 = vld [vmem:[%s3] sm:$0xf]
      %v1456 = vld [vmem:[%s3 + $0x4] sm:$0xf]
      %v1457 = vld [vmem:[%s3 + $0x8] sm:$0xf]
      %v1458 = vld [vmem:[%s3 + $0xc] sm:$0xf]
      %v1459 = vld [vmem:[%s3 + $0x10] sm:$0xf]
      %v1460 = vld [vmem:[%s3 + $0x14] sm:$0xf]
      %v1461 = vld [vmem:[%s3 + $0x18] sm:$0xf]
      %v1462 = vld [vmem:[%s3 + $0x1c] sm:$0xf]
      %v1463 = vld [vmem:[%s3 + $0x20] sm:$0xf]
      %v1464 = vld [vmem:[%s3 + $0x24] sm:$0xf]
      %v1465 = vld [vmem:[%s3 + $0x28] sm:$0xf]
      %v1466 = vld [vmem:[%s3 + $0x2c] sm:$0xf]
      %v1467 = vld [vmem:[%s3 + $0x30] sm:$0xf]
      %v1468 = vld [vmem:[%s3 + $0x34] sm:$0xf]
      %v1469 = vld [vmem:[%s3 + $0x38] sm:$0xf]
      %v1470 = vld [vmem:[%s3 + $0x3c] sm:$0xf]
      %v1471 = vld [vmem:[%s4] sm:$0x1]
      %v1473 = vlaneseq
      %v1474 = vshrl.u32 %v1473, 7
      %v1475 = vsub.s32 0, %v1474
      %v1476 = vrot.slane %v1471, %v1475
      %v1494 = vunpack.c.l.b16 %v1455
      %v1495 = vunpack.c.l.b16 %v1456
      %v1496 = vunpack.c.l.b16 %v1457
      %v1497 = vunpack.c.l.b16 %v1458
      %v1498 = vunpack.c.l.b16 %v1459
      %v1499 = vunpack.c.l.b16 %v1460
      %v1500 = vunpack.c.l.b16 %v1461
      %v1501 = vunpack.c.l.b16 %v1462
      %v1502 = vunpack.c.l.b16 %v1463
      %v1503 = vunpack.c.l.b16 %v1464
      %v1504 = vunpack.c.l.b16 %v1465
      %v1505 = vunpack.c.l.b16 %v1466
      %v1506 = vunpack.c.l.b16 %v1467
      %v1507 = vunpack.c.l.b16 %v1468
      %v1508 = vunpack.c.l.b16 %v1469
      %v1509 = vunpack.c.l.b16 %v1470
      %v1510 = vpack.c.b16 %v1495, %v1494
      %v1511 = vpack.c.b16 %v1497, %v1496
      %v1512 = vpack.c.b16 %v1499, %v1498
      %v1513 = vpack.c.b16 %v1501, %v1500
      %v1514 = vpack.c.b16 %v1503, %v1502
      %v1515 = vpack.c.b16 %v1505, %v1504
      %v1516 = vpack.c.b16 %v1507, %v1506
      %v1517 = vpack.c.b16 %v1509, %v1508
      %1526 = vmatprep.subr.bf16.mxu0 0
      %1527 = vmatpush1.bf16.msra.mxu0 %v1517
      %1528 = vmatprep.subr.bf16.mxu0 0
      %1529 = vmatpush1.bf16.msra.mxu0 %v1516
      %1530 = vmatprep.subr.bf16.mxu0 0
      %1531 = vmatpush1.bf16.msra.mxu0 %v1515
      %1532 = vmatprep.subr.bf16.mxu0 0
      %1533 = vmatpush1.bf16.msra.mxu0 %v1514
      %1534 = vmatprep.subr.bf16.mxu0 0
      %1535 = vmatpush1.bf16.msra.mxu0 %v1513
      %1536 = vmatprep.subr.bf16.mxu0 0
      %1537 = vmatpush1.bf16.msra.mxu0 %v1512
      %1538 = vmatprep.subr.bf16.mxu0 0
      %1539 = vmatpush1.bf16.msra.mxu0 %v1511
      %1540 = vmatprep.subr.bf16.mxu0 0
      %1541 = vmatpush1.bf16.msra.mxu0 %v1510
      %1542 = vmatprep.subr.bf16.mxu0 0
      %1543 = vmatpush2.bf16.msra.mxu0 0
      %1544 = vmatprep.subr.bf16.mxu0 0
      %1545 = vmatpush2.bf16.msra.mxu0 0
      %1546 = vmatprep.subr.bf16.mxu0 0
      %1547 = vmatpush2.bf16.msra.mxu0 0
      %1548 = vmatprep.subr.bf16.mxu0 0
      %1549 = vmatpush2.bf16.msra.mxu0 0
      %1550 = vmatprep.subr.bf16.mxu0 0
      %1551 = vmatpush2.bf16.msra.mxu0 0
      %1552 = vmatprep.subr.bf16.mxu0 0
      %1553 = vmatpush2.bf16.msra.mxu0 0
      %1554 = vmatprep.subr.bf16.mxu0 0
      %1555 = vmatpush2.bf16.msra.mxu0 0
      %1556 = vmatprep.subr.bf16.mxu0 0
      %1557 = vmatpush2.bf16.msra.mxu0 0
      %1558 = vmatprep.mubr.bf16.mxu0 0
      %1559 = vmatmul.mubr.bf16.gmra.mxu0 %v1451
      %v1560 = vpop.f32.mrf.mxu0
      %v1561 = vadd.f32 %v1476, %v1560
      %v1562 = vpop.f32.mrf.mxu0
      %v1563 = vpop.f32.mrf.mxu0
      %v1564 = vadd.f32 %v1476, %v1563
      %v1565 = vpop.f32.mrf.mxu0
      %1566 = vmatprep.mubr.bf16.mxu0 0
      %1567 = vmatmul.mubr.bf16.gmra.mxu0 %v1452
      %v1568 = vpop.f32.mrf.mxu0
      %v1569 = vadd.f32 %v1476, %v1568
      %v1570 = vpop.f32.mrf.mxu0
      %v1571 = vpop.f32.mrf.mxu0
      %v1572 = vadd.f32 %v1476, %v1571
      %v1573 = vpop.f32.mrf.mxu0
      %1574 = vmatprep.mubr.bf16.mxu0 0
      %1575 = vmatmul.mubr.bf16.gmra.mxu0 %v1453
      %v1576 = vpop.f32.mrf.mxu0
      %v1577 = vadd.f32 %v1476, %v1576
      %v1578 = vpop.f32.mrf.mxu0
      %v1579 = vpop.f32.mrf.mxu0
      %v1580 = vadd.f32 %v1476, %v1579
      %v1581 = vpop.f32.mrf.mxu0
      %1582 = vmatprep.mubr.bf16.mxu0 0
      %1583 = vmatmul.mubr.bf16.gmra.mxu0 %v1454
      %v1584 = vpop.f32.mrf.mxu0
      %v1585 = vadd.f32 %v1476, %v1584
      %v1586 = vpop.f32.mrf.mxu0
      %v1587 = vpop.f32.mrf.mxu0
      %v1588 = vadd.f32 %v1476, %v1587
      %v1589 = vpop.f32.mrf.mxu0
      %1590 = vdwg.mxu0
      %v1591 = vmax.f32 %v1561, 0.0
      %v1592 = vmax.f32 %v1564, 0.0
      %v1593 = vmax.f32 %v1569, 0.0
      %v1594 = vmax.f32 %v1572, 0.0
      %v1595 = vmax.f32 %v1577, 0.0
      %v1596 = vmax.f32 %v1580, 0.0
      %v1597 = vmax.f32 %v1585, 0.0
      %v1598 = vmax.f32 %v1588, 0.0
      %v1599 = vpack.c.bf16 %v1592, %v1591
      %v1600 = vpack.c.bf16 %v1594, %v1593
      %v1601 = vpack.c.bf16 %v1596, %v1595
      %v1602 = vpack.c.bf16 %v1598, %v1597
      %v1603 = vld [vmem:[%s5] sm:$0xf]
      %v1604 = vld [vmem:[%s5 + $0x4] sm:$0xf]
      %v1605 = vld [vmem:[%s5 + $0x8] sm:$0xf]
      %v1606 = vld [vmem:[%s5 + $0xc] sm:$0xf]
      %v1607 = vld [vmem:[%s5 + $0x10] sm:$0xf]
      %v1608 = vld [vmem:[%s5 + $0x14] sm:$0xf]
      %v1609 = vld [vmem:[%s5 + $0x18] sm:$0xf]
      %v1610 = vld [vmem:[%s5 + $0x1c] sm:$0xf]
      %v1611 = vld [vmem:[%s6] sm:$0x1]
      %v1613 = vlaneseq
      %v1614 = vshrl.u32 %v1613, 7
      %v1615 = vsub.s32 0, %v1614
      %v1616 = vrot.slane %v1611, %v1615
      %v1626 = vunpack.c.l.b16 %v1603
      %v1627 = vunpack.c.l.b16 %v1604
      %v1628 = vunpack.c.l.b16 %v1605
      %v1629 = vunpack.c.l.b16 %v1606
      %v1630 = vunpack.c.l.b16 %v1607
      %v1631 = vunpack.c.l.b16 %v1608
      %v1632 = vunpack.c.l.b16 %v1609
      %v1633 = vunpack.c.l.b16 %v1610
      %v1634 = vpack.c.b16 %v1627, %v1626
      %v1635 = vpack.c.b16 %v1629, %v1628
      %v1636 = vpack.c.b16 %v1631, %v1630
      %v1637 = vpack.c.b16 %v1633, %v1632
      %vm1642 = vcmask 523264
      %v1644 = vsel %vm1642, %v1599, 0
      %v1647 = vsel %vm1642, %v1600, 0
      %v1650 = vsel %vm1642, %v1601, 0
      %v1653 = vsel %vm1642, %v1602, 0
      %1655 = vmatprep.subr.bf16.mxu0 0
      %1656 = vmatpush1.bf16.msra.mxu0 0
      %1657 = vmatprep.subr.bf16.mxu0 0
      %1658 = vmatpush1.bf16.msra.mxu0 0
      %1659 = vmatprep.subr.bf16.mxu0 0
      %1660 = vmatpush1.bf16.msra.mxu0 0
      %1661 = vmatprep.subr.bf16.mxu0 0
      %1662 = vmatpush1.bf16.msra.mxu0 0
      %1663 = vmatprep.subr.bf16.mxu0 0
      %1664 = vmatpush1.bf16.msra.mxu0 %v1637
      %1665 = vmatprep.subr.bf16.mxu0 0
      %1666 = vmatpush1.bf16.msra.mxu0 %v1636
      %1667 = vmatprep.subr.bf16.mxu0 0
      %1668 = vmatpush1.bf16.msra.mxu0 %v1635
      %1669 = vmatprep.subr.bf16.mxu0 0
      %1670 = vmatpush1.bf16.msra.mxu0 %v1634
      %1671 = vmatprep.subr.bf16.mxu0 0
      %1672 = vmatpush2.bf16.msra.mxu0 0
      %1673 = vmatprep.subr.bf16.mxu0 0
      %1674 = vmatpush2.bf16.msra.mxu0 0
      %1675 = vmatprep.subr.bf16.mxu0 0
      %1676 = vmatpush2.bf16.msra.mxu0 0
      %1677 = vmatprep.subr.bf16.mxu0 0
      %1678 = vmatpush2.bf16.msra.mxu0 0
      %1679 = vmatprep.subr.bf16.mxu0 0
      %1680 = vmatpush2.bf16.msra.mxu0 0
      %1681 = vmatprep.subr.bf16.mxu0 0
      %1682 = vmatpush2.bf16.msra.mxu0 0
      %1683 = vmatprep.subr.bf16.mxu0 0
      %1684 = vmatpush2.bf16.msra.mxu0 0
      %1685 = vmatprep.subr.bf16.mxu0 0
      %1686 = vmatpush2.bf16.msra.mxu0 0
      %1687 = vmatprep.mubr.bf16.mxu0 0
      %1688 = vmatmul.mubr.bf16.gmra.mxu0 %v1644
      %v1689 = vpop.f32.mrf.mxu0
      %v1690 = vadd.f32 %v1616, %v1689
      %v1691 = vpop.f32.mrf.mxu0
      %v1692 = vpop.f32.mrf.mxu0
      %v1693 = vadd.f32 %v1616, %v1692
      %v1694 = vpop.f32.mrf.mxu0
      %1695 = vmatprep.mubr.bf16.mxu0 0
      %1696 = vmatmul.mubr.bf16.gmra.mxu0 %v1647
      %v1697 = vpop.f32.mrf.mxu0
      %v1698 = vadd.f32 %v1616, %v1697
      %v1699 = vpop.f32.mrf.mxu0
      %v1700 = vpop.f32.mrf.mxu0
      %v1701 = vadd.f32 %v1616, %v1700
      %v1702 = vpop.f32.mrf.mxu0
      %1703 = vmatprep.mubr.bf16.mxu0 0
      %1704 = vmatmul.mubr.bf16.gmra.mxu0 %v1650
      %v1705 = vpop.f32.mrf.mxu0
      %v1706 = vadd.f32 %v1616, %v1705
      %v1707 = vpop.f32.mrf.mxu0
      %v1708 = vpop.f32.mrf.mxu0
      %v1709 = vadd.f32 %v1616, %v1708
      %v1710 = vpop.f32.mrf.mxu0
      %1711 = vmatprep.mubr.bf16.mxu0 0
      %1712 = vmatmul.mubr.bf16.gmra.mxu0 %v1653
      %v1713 = vpop.f32.mrf.mxu0
      %v1714 = vadd.f32 %v1616, %v1713
      %v1715 = vpop.f32.mrf.mxu0
      %v1716 = vpop.f32.mrf.mxu0
      %v1717 = vadd.f32 %v1616, %v1716
      %v1718 = vpop.f32.mrf.mxu0
      %1719 = vdwg.mxu0
      %v1720 = vmax.f32 %v1690, 0.0
      %v1721 = vmax.f32 %v1693, 0.0
      %v1722 = vmax.f32 %v1698, 0.0
      %v1723 = vmax.f32 %v1701, 0.0
      %v1724 = vmax.f32 %v1706, 0.0
      %v1725 = vmax.f32 %v1709, 0.0
      %v1726 = vmax.f32 %v1714, 0.0
      %v1727 = vmax.f32 %v1717, 0.0
      %v1728 = vpack.c.bf16 %v1721, %v1720
      %v1729 = vpack.c.bf16 %v1723, %v1722
      %v1730 = vpack.c.bf16 %v1725, %v1724
      %v1731 = vpack.c.bf16 %v1727, %v1726
      %v1732 = vld [vmem:[%s7] sm:$0xf]
      %v1733 = vld [vmem:[%s7 + $0x4] sm:$0x3]
      %v1734 = vld [vmem:[%s8] sm:$0x1]
      %v1736 = vlaneseq
      %v1737 = vshrl.u32 %v1736, 7
      %v1738 = vsub.s32 0, %v1737
      %v1739 = vrot.slane %v1734, %v1738
      %v1743 = vunpack.c.l.b16 %v1732
      %v1744 = vunpack.c.l.b16 %v1733
      %v1745 = vpack.c.b16 %v1744, %v1743
      %vm1746 = vcmask 97280
      %v1748 = vsel %vm1746, %v1728, 0
      %v1751 = vsel %vm1746, %v1729, 0
      %v1754 = vsel %vm1746, %v1730, 0
      %v1757 = vsel %vm1746, %v1731, 0
      %vm1759 = vcmask 1045504
      %v1761 = vsel %vm1759, %v1745, 0
      %1763 = vmatprep.subr.bf16.mxu0 0
      %1764 = vmatpush1.bf16.msra.mxu0 0
      %1765 = vmatprep.subr.bf16.mxu0 0
      %1766 = vmatpush1.bf16.msra.mxu0 0
      %1767 = vmatprep.subr.bf16.mxu0 0
      %1768 = vmatpush1.bf16.msra.mxu0 0
      %1769 = vmatprep.subr.bf16.mxu0 0
      %1770 = vmatpush1.bf16.msra.mxu0 0
      %1771 = vmatprep.subr.bf16.mxu0 0
      %1772 = vmatpush1.bf16.msra.mxu0 0
      %1773 = vmatprep.subr.bf16.mxu0 0
      %1774 = vmatpush1.bf16.msra.mxu0 0
      %1775 = vmatprep.subr.bf16.mxu0 0
      %1776 = vmatpush1.bf16.msra.mxu0 0
      %1777 = vmatprep.subr.bf16.mxu0 0
      %1778 = vmatpush1.bf16.msra.mxu0 %v1761
      %1779 = vmatprep.subr.bf16.mxu0 0
      %1780 = vmatpush2.bf16.msra.mxu0 0
      %1781 = vmatprep.subr.bf16.mxu0 0
      %1782 = vmatpush2.bf16.msra.mxu0 0
      %1783 = vmatprep.subr.bf16.mxu0 0
      %1784 = vmatpush2.bf16.msra.mxu0 0
      %1785 = vmatprep.subr.bf16.mxu0 0
      %1786 = vmatpush2.bf16.msra.mxu0 0
      %1787 = vmatprep.subr.bf16.mxu0 0
      %1788 = vmatpush2.bf16.msra.mxu0 0
      %1789 = vmatprep.subr.bf16.mxu0 0
      %1790 = vmatpush2.bf16.msra.mxu0 0
      %1791 = vmatprep.subr.bf16.mxu0 0
      %1792 = vmatpush2.bf16.msra.mxu0 0
      %1793 = vmatprep.subr.bf16.mxu0 0
      %1794 = vmatpush2.bf16.msra.mxu0 0
      %1795 = vmatprep.mubr.bf16.mxu0 0
      %1796 = vmatmul.mubr.bf16.gmra.mxu0 %v1748
      %v1797 = vpop.f32.mrf.mxu0
      %v1798 = vadd.f32 %v1739, %v1797
      %v1799 = vpop.f32.mrf.mxu0
      %v1800 = vpop.f32.mrf.mxu0
      %v1801 = vadd.f32 %v1739, %v1800
      %v1802 = vpop.f32.mrf.mxu0
      %1803 = vmatprep.mubr.bf16.mxu0 0
      %1804 = vmatmul.mubr.bf16.gmra.mxu0 %v1751
      %v1805 = vpop.f32.mrf.mxu0
      %v1806 = vadd.f32 %v1739, %v1805
      %v1807 = vpop.f32.mrf.mxu0
      %v1808 = vpop.f32.mrf.mxu0
      %v1809 = vadd.f32 %v1739, %v1808
      %v1810 = vpop.f32.mrf.mxu0
      %1811 = vmatprep.mubr.bf16.mxu0 0
      %1812 = vmatmul.mubr.bf16.gmra.mxu0 %v1754
      %v1813 = vpop.f32.mrf.mxu0
      %v1814 = vadd.f32 %v1739, %v1813
      %v1815 = vpop.f32.mrf.mxu0
      %v1816 = vpop.f32.mrf.mxu0
      %v1817 = vadd.f32 %v1739, %v1816
      %v1818 = vpop.f32.mrf.mxu0
      %1819 = vmatprep.mubr.bf16.mxu0 0
      %1820 = vmatmul.mubr.bf16.gmra.mxu0 %v1757
      %v1821 = vpop.f32.mrf.mxu0
      %v1822 = vadd.f32 %v1739, %v1821
      %v1823 = vpop.f32.mrf.mxu0
      %v1824 = vpop.f32.mrf.mxu0
      %v1825 = vadd.f32 %v1739, %v1824
      %v1826 = vpop.f32.mrf.mxu0
      %1827 = vdwg.mxu0
      %vm1828 = vcmask 23552
      %1829 = vst.msk [vmem:[%s589] sm:$0xff] %vm1828, %v1798
      %1830 = vst.msk [vmem:[%s589 + $0x8] sm:$0xff] %vm1828, %v1801
      %1831 = vst.msk [vmem:[%s589 + $0x10] sm:$0xff] %vm1828, %v1806
      %1832 = vst.msk [vmem:[%s589 + $0x18] sm:$0xff] %vm1828, %v1809
      %1833 = vst.msk [vmem:[%s589 + $0x20] sm:$0xff] %vm1828, %v1814
      %1834 = vst.msk [vmem:[%s589 + $0x28] sm:$0xff] %vm1828, %v1817
      %1835 = vst.msk [vmem:[%s589 + $0x30] sm:$0xff] %vm1828, %v1822
      %1836 = vst.msk [vmem:[%s589 + $0x38] sm:$0xff] %vm1828, %v1825
      %v1837 = vld [vmem:[%s9] sm:$0xf]
      %v1838 = vld [vmem:[%s9 + $0x4] sm:$0x3]
      %v1839 = vld [vmem:[%s10] sm:$0x1]
      %v1841 = vlaneseq
      %v1842 = vshrl.u32 %v1841, 7
      %v1843 = vsub.s32 0, %v1842
      %v1844 = vrot.slane %v1839, %v1843
      %v1848 = vunpack.c.l.b16 %v1837
      %v1849 = vunpack.c.l.b16 %v1838
      %v1850 = vpack.c.b16 %v1849, %v1848
      %v1852 = vsel %vm1759, %v1850, 0
      %1854 = vmatprep.subr.bf16.mxu0 0
      %1855 = vmatpush1.bf16.msra.mxu0 0
      %1856 = vmatprep.subr.bf16.mxu0 0
      %1857 = vmatpush1.bf16.msra.mxu0 0
      %1858 = vmatprep.subr.bf16.mxu0 0
      %1859 = vmatpush1.bf16.msra.mxu0 0
      %1860 = vmatprep.subr.bf16.mxu0 0
      %1861 = vmatpush1.bf16.msra.mxu0 0
      %1862 = vmatprep.subr.bf16.mxu0 0
      %1863 = vmatpush1.bf16.msra.mxu0 0
      %1864 = vmatprep.subr.bf16.mxu0 0
      %1865 = vmatpush1.bf16.msra.mxu0 0
      %1866 = vmatprep.subr.bf16.mxu0 0
      %1867 = vmatpush1.bf16.msra.mxu0 0
      %1868 = vmatprep.subr.bf16.mxu0 0
      %1869 = vmatpush1.bf16.msra.mxu0 %v1852
      %1870 = vmatprep.subr.bf16.mxu0 0
      %1871 = vmatpush2.bf16.msra.mxu0 0
      %1872 = vmatprep.subr.bf16.mxu0 0
      %1873 = vmatpush2.bf16.msra.mxu0 0
      %1874 = vmatprep.subr.bf16.mxu0 0
      %1875 = vmatpush2.bf16.msra.mxu0 0
      %1876 = vmatprep.subr.bf16.mxu0 0
      %1877 = vmatpush2.bf16.msra.mxu0 0
      %1878 = vmatprep.subr.bf16.mxu0 0
      %1879 = vmatpush2.bf16.msra.mxu0 0
      %1880 = vmatprep.subr.bf16.mxu0 0
      %1881 = vmatpush2.bf16.msra.mxu0 0
      %1882 = vmatprep.subr.bf16.mxu0 0
      %1883 = vmatpush2.bf16.msra.mxu0 0
      %1884 = vmatprep.subr.bf16.mxu0 0
      %1885 = vmatpush2.bf16.msra.mxu0 0
      %1886 = vmatprep.mubr.bf16.mxu0 0
      %1887 = vmatmul.mubr.bf16.gmra.mxu0 %v1748
      %v1888 = vpop.f32.mrf.mxu0
      %v1889 = vadd.f32 %v1844, %v1888
      %v1890 = vpop.f32.mrf.mxu0
      %v1891 = vpop.f32.mrf.mxu0
      %v1892 = vadd.f32 %v1844, %v1891
      %v1893 = vpop.f32.mrf.mxu0
      %1894 = vmatprep.mubr.bf16.mxu0 0
      %1895 = vmatmul.mubr.bf16.gmra.mxu0 %v1751
      %v1896 = vpop.f32.mrf.mxu0
      %v1897 = vadd.f32 %v1844, %v1896
      %v1898 = vpop.f32.mrf.mxu0
      %v1899 = vpop.f32.mrf.mxu0
      %v1900 = vadd.f32 %v1844, %v1899
      %v1901 = vpop.f32.mrf.mxu0
      %1902 = vmatprep.mubr.bf16.mxu0 0
      %1903 = vmatmul.mubr.bf16.gmra.mxu0 %v1754
      %v1904 = vpop.f32.mrf.mxu0
      %v1905 = vadd.f32 %v1844, %v1904
      %v1906 = vpop.f32.mrf.mxu0
      %v1907 = vpop.f32.mrf.mxu0
      %v1908 = vadd.f32 %v1844, %v1907
      %v1909 = vpop.f32.mrf.mxu0
      %1910 = vmatprep.mubr.bf16.mxu0 0
      %1911 = vmatmul.mubr.bf16.gmra.mxu0 %v1757
      %v1912 = vpop.f32.mrf.mxu0
      %v1913 = vadd.f32 %v1844, %v1912
      %v1914 = vpop.f32.mrf.mxu0
      %v1915 = vpop.f32.mrf.mxu0
      %v1916 = vadd.f32 %v1844, %v1915
      %v1917 = vpop.f32.mrf.mxu0
      %1918 = vdwg.mxu0
      %v1919 = vmax.f32 %v1889, 0.0
      %v1920 = vmax.f32 %v1892, 0.0
      %v1921 = vmax.f32 %v1897, 0.0
      %v1922 = vmax.f32 %v1900, 0.0
      %v1923 = vmax.f32 %v1905, 0.0
      %v1924 = vmax.f32 %v1908, 0.0
      %v1925 = vmax.f32 %v1913, 0.0
      %v1926 = vmax.f32 %v1916, 0.0
      %v1927 = vpack.c.bf16 %v1920, %v1919
      %v1928 = vpack.c.bf16 %v1922, %v1921
      %v1929 = vpack.c.bf16 %v1924, %v1923
      %v1930 = vpack.c.bf16 %v1926, %v1925
      %v1931 = vld [vmem:[%s11] sm:$0xf]
      %v1932 = vld [vmem:[%s11 + $0x4] sm:$0x3]
      %v1933 = vld [vmem:[%s12] sm:$0x1]
      %v1935 = vlaneseq
      %v1936 = vshrl.u32 %v1935, 7
      %v1937 = vsub.s32 0, %v1936
      %v1938 = vrot.slane %v1933, %v1937
      %v1942 = vunpack.c.l.b16 %v1931
      %v1943 = vunpack.c.l.b16 %v1932
      %v1944 = vpack.c.b16 %v1943, %v1942
      %v1946 = vsel %vm1746, %v1927, 0
      %v1949 = vsel %vm1746, %v1928, 0
      %v1952 = vsel %vm1746, %v1929, 0
      %v1955 = vsel %vm1746, %v1930, 0
      %v1958 = vsel %vm1759, %v1944, 0
      %1960 = vmatprep.subr.bf16.mxu0 0
      %1961 = vmatpush1.bf16.msra.mxu0 0
      %1962 = vmatprep.subr.bf16.mxu0 0
      %1963 = vmatpush1.bf16.msra.mxu0 0
      %1964 = vmatprep.subr.bf16.mxu0 0
      %1965 = vmatpush1.bf16.msra.mxu0 0
      %1966 = vmatprep.subr.bf16.mxu0 0
      %1967 = vmatpush1.bf16.msra.mxu0 0
      %1968 = vmatprep.subr.bf16.mxu0 0
      %1969 = vmatpush1.bf16.msra.mxu0 0
      %1970 = vmatprep.subr.bf16.mxu0 0
      %1971 = vmatpush1.bf16.msra.mxu0 0
      %1972 = vmatprep.subr.bf16.mxu0 0
      %1973 = vmatpush1.bf16.msra.mxu0 0
      %1974 = vmatprep.subr.bf16.mxu0 0
      %1975 = vmatpush1.bf16.msra.mxu0 %v1958
      %1976 = vmatprep.subr.bf16.mxu0 0
      %1977 = vmatpush2.bf16.msra.mxu0 0
      %1978 = vmatprep.subr.bf16.mxu0 0
      %1979 = vmatpush2.bf16.msra.mxu0 0
      %1980 = vmatprep.subr.bf16.mxu0 0
      %1981 = vmatpush2.bf16.msra.mxu0 0
      %1982 = vmatprep.subr.bf16.mxu0 0
      %1983 = vmatpush2.bf16.msra.mxu0 0
      %1984 = vmatprep.subr.bf16.mxu0 0
      %1985 = vmatpush2.bf16.msra.mxu0 0
      %1986 = vmatprep.subr.bf16.mxu0 0
      %1987 = vmatpush2.bf16.msra.mxu0 0
      %1988 = vmatprep.subr.bf16.mxu0 0
      %1989 = vmatpush2.bf16.msra.mxu0 0
      %1990 = vmatprep.subr.bf16.mxu0 0
      %1991 = vmatpush2.bf16.msra.mxu0 0
      %1992 = vmatprep.mubr.bf16.mxu0 0
      %1993 = vmatmul.mubr.bf16.gmra.mxu0 %v1946
      %v1994 = vpop.f32.mrf.mxu0
      %v1995 = vadd.f32 %v1938, %v1994
      %v1996 = vpop.f32.mrf.mxu0
      %v1997 = vpop.f32.mrf.mxu0
      %v1998 = vadd.f32 %v1938, %v1997
      %v1999 = vpop.f32.mrf.mxu0
      %2000 = vmatprep.mubr.bf16.mxu0 0
      %2001 = vmatmul.mubr.bf16.gmra.mxu0 %v1949
      %v2002 = vpop.f32.mrf.mxu0
      %v2003 = vadd.f32 %v1938, %v2002
      %v2004 = vpop.f32.mrf.mxu0
      %v2005 = vpop.f32.mrf.mxu0
      %v2006 = vadd.f32 %v1938, %v2005
      %v2007 = vpop.f32.mrf.mxu0
      %2008 = vmatprep.mubr.bf16.mxu0 0
      %2009 = vmatmul.mubr.bf16.gmra.mxu0 %v1952
      %v2010 = vpop.f32.mrf.mxu0
      %v2011 = vadd.f32 %v1938, %v2010
      %v2012 = vpop.f32.mrf.mxu0
      %v2013 = vpop.f32.mrf.mxu0
      %v2014 = vadd.f32 %v1938, %v2013
      %v2015 = vpop.f32.mrf.mxu0
      %2016 = vmatprep.mubr.bf16.mxu0 0
      %2017 = vmatmul.mubr.bf16.gmra.mxu0 %v1955
      %v2018 = vpop.f32.mrf.mxu0
      %v2019 = vadd.f32 %v1938, %v2018
      %v2020 = vpop.f32.mrf.mxu0
      %v2021 = vpop.f32.mrf.mxu0
      %v2022 = vadd.f32 %v1938, %v2021
      %v2023 = vpop.f32.mrf.mxu0
      %2024 = vdwg.mxu0
      %v2025 = vmax.f32 %v1995, 0.0
      %v2026 = vmax.f32 %v1998, 0.0
      %v2027 = vmax.f32 %v2003, 0.0
      %v2028 = vmax.f32 %v2006, 0.0
      %v2029 = vmax.f32 %v2011, 0.0
      %v2030 = vmax.f32 %v2014, 0.0
      %v2031 = vmax.f32 %v2019, 0.0
      %v2032 = vmax.f32 %v2022, 0.0
      %v2033 = vpack.c.bf16 %v2026, %v2025
      %v2034 = vpack.c.bf16 %v2028, %v2027
      %v2035 = vpack.c.bf16 %v2030, %v2029
      %v2036 = vpack.c.bf16 %v2032, %v2031
      %v2037 = vld [vmem:[%s13] sm:$0xf]
      %v2038 = vld [vmem:[%s13 + $0x4] sm:$0xf]
      %v2039 = vld [vmem:[%s13 + $0x8] sm:$0xf]
      %v2040 = vld [vmem:[%s13 + $0xc] sm:$0xf]
      %v2041 = vld [vmem:[%s13 + $0x10] sm:$0xf]
      %v2042 = vld [vmem:[%s13 + $0x14] sm:$0xf]
      %v2043 = vld [vmem:[%s13 + $0x18] sm:$0xf]
      %v2044 = vld [vmem:[%s13 + $0x1c] sm:$0xf]
      %v2045 = vld [vmem:[%s14] sm:$0x1]
      %v2047 = vlaneseq
      %v2048 = vshrl.u32 %v2047, 7
      %v2049 = vsub.s32 0, %v2048
      %v2050 = vrot.slane %v2045, %v2049
      %v2060 = vunpack.c.l.b16 %v2037
      %v2061 = vunpack.c.l.b16 %v2038
      %v2062 = vunpack.c.l.b16 %v2039
      %v2063 = vunpack.c.l.b16 %v2040
      %v2064 = vunpack.c.l.b16 %v2041
      %v2065 = vunpack.c.l.b16 %v2042
      %v2066 = vunpack.c.l.b16 %v2043
      %v2067 = vunpack.c.l.b16 %v2044
      %v2068 = vpack.c.b16 %v2061, %v2060
      %v2069 = vpack.c.b16 %v2063, %v2062
      %v2070 = vpack.c.b16 %v2065, %v2064
      %v2071 = vpack.c.b16 %v2067, %v2066
      %v2077 = vsel %vm1642, %v2033, 0
      %v2080 = vsel %vm1642, %v2034, 0
      %v2083 = vsel %vm1642, %v2035, 0
      %v2086 = vsel %vm1642, %v2036, 0
      %2088 = vmatprep.subr.bf16.mxu0 0
      %2089 = vmatpush1.bf16.msra.mxu0 0
      %2090 = vmatprep.subr.bf16.mxu0 0
      %2091 = vmatpush1.bf16.msra.mxu0 0
      %2092 = vmatprep.subr.bf16.mxu0 0
      %2093 = vmatpush1.bf16.msra.mxu0 0
      %2094 = vmatprep.subr.bf16.mxu0 0
      %2095 = vmatpush1.bf16.msra.mxu0 0
      %2096 = vmatprep.subr.bf16.mxu0 0
      %2097 = vmatpush1.bf16.msra.mxu0 %v2071
      %2098 = vmatprep.subr.bf16.mxu0 0
      %2099 = vmatpush1.bf16.msra.mxu0 %v2070
      %2100 = vmatprep.subr.bf16.mxu0 0
      %2101 = vmatpush1.bf16.msra.mxu0 %v2069
      %2102 = vmatprep.subr.bf16.mxu0 0
      %2103 = vmatpush1.bf16.msra.mxu0 %v2068
      %2104 = vmatprep.subr.bf16.mxu0 0
      %2105 = vmatpush2.bf16.msra.mxu0 0
      %2106 = vmatprep.subr.bf16.mxu0 0
      %2107 = vmatpush2.bf16.msra.mxu0 0
      %2108 = vmatprep.subr.bf16.mxu0 0
      %2109 = vmatpush2.bf16.msra.mxu0 0
      %2110 = vmatprep.subr.bf16.mxu0 0
      %2111 = vmatpush2.bf16.msra.mxu0 0
      %2112 = vmatprep.subr.bf16.mxu0 0
      %2113 = vmatpush2.bf16.msra.mxu0 0
      %2114 = vmatprep.subr.bf16.mxu0 0
      %2115 = vmatpush2.bf16.msra.mxu0 0
      %2116 = vmatprep.subr.bf16.mxu0 0
      %2117 = vmatpush2.bf16.msra.mxu0 0
      %2118 = vmatprep.subr.bf16.mxu0 0
      %2119 = vmatpush2.bf16.msra.mxu0 0
      %2120 = vmatprep.mubr.bf16.mxu0 0
      %2121 = vmatmul.mubr.bf16.gmra.mxu0 %v2077
      %v2122 = vpop.f32.mrf.mxu0
      %v2123 = vadd.f32 %v2050, %v2122
      %v2124 = vpop.f32.mrf.mxu0
      %v2125 = vpop.f32.mrf.mxu0
      %v2126 = vadd.f32 %v2050, %v2125
      %v2127 = vpop.f32.mrf.mxu0
      %2128 = vmatprep.mubr.bf16.mxu0 0
      %2129 = vmatmul.mubr.bf16.gmra.mxu0 %v2080
      %v2130 = vpop.f32.mrf.mxu0
      %v2131 = vadd.f32 %v2050, %v2130
      %v2132 = vpop.f32.mrf.mxu0
      %v2133 = vpop.f32.mrf.mxu0
      %v2134 = vadd.f32 %v2050, %v2133
      %v2135 = vpop.f32.mrf.mxu0
      %2136 = vmatprep.mubr.bf16.mxu0 0
      %2137 = vmatmul.mubr.bf16.gmra.mxu0 %v2083
      %v2138 = vpop.f32.mrf.mxu0
      %v2139 = vadd.f32 %v2050, %v2138
      %v2140 = vpop.f32.mrf.mxu0
      %v2141 = vpop.f32.mrf.mxu0
      %v2142 = vadd.f32 %v2050, %v2141
      %v2143 = vpop.f32.mrf.mxu0
      %2144 = vmatprep.mubr.bf16.mxu0 0
      %2145 = vmatmul.mubr.bf16.gmra.mxu0 %v2086
      %v2146 = vpop.f32.mrf.mxu0
      %v2147 = vadd.f32 %v2050, %v2146
      %v2148 = vpop.f32.mrf.mxu0
      %v2149 = vpop.f32.mrf.mxu0
      %v2150 = vadd.f32 %v2050, %v2149
      %v2151 = vpop.f32.mrf.mxu0
      %2152 = vdwg.mxu0
      %v2153 = vmax.f32 %v2123, 0.0
      %v2154 = vmax.f32 %v2126, 0.0
      %v2155 = vmax.f32 %v2131, 0.0
      %v2156 = vmax.f32 %v2134, 0.0
      %v2157 = vmax.f32 %v2139, 0.0
      %v2158 = vmax.f32 %v2142, 0.0
      %v2159 = vmax.f32 %v2147, 0.0
      %v2160 = vmax.f32 %v2150, 0.0
      %v2161 = vpack.c.bf16 %v2154, %v2153
      %v2162 = vpack.c.bf16 %v2156, %v2155
      %v2163 = vpack.c.bf16 %v2158, %v2157
      %v2164 = vpack.c.bf16 %v2160, %v2159
      %v2165 = vld [vmem:[%s15] sm:$0xff]
      %v2166 = vld [vmem:[%s15 + $0x8] sm:$0xff]
      %v2167 = vld [vmem:[%s15 + $0x10] sm:$0xff]
      %v2168 = vld [vmem:[%s15 + $0x18] sm:$0xf]
      %v2169 = vld [vmem:[%s15 + $0x1c] sm:$0xff]
      %v2170 = vld [vmem:[%s15 + $0x24] sm:$0xff]
      %v2171 = vld [vmem:[%s15 + $0x2c] sm:$0xff]
      %v2172 = vld [vmem:[%s15 + $0x34] sm:$0xf]
      %v2173 = vld [vmem:[%s15 + $0x38] sm:$0xff]
      %v2174 = vld [vmem:[%s15 + $0x40] sm:$0xff]
      %v2175 = vld [vmem:[%s15 + $0x48] sm:$0xff]
      %v2176 = vld [vmem:[%s15 + $0x50] sm:$0xf]
      %v2177 = vld [vmem:[%s15 + $0x54] sm:$0xff]
      %v2178 = vld [vmem:[%s15 + $0x5c] sm:$0xff]
      %v2179 = vld [vmem:[%s15 + $0x64] sm:$0xff]
      %v2180 = vld [vmem:[%s15 + $0x6c] sm:$0xf]
      %v2181 = vld [vmem:[%s15 + $0x70] sm:$0xff]
      %v2182 = vld [vmem:[%s15 + $0x78] sm:$0xff]
      %v2183 = vld [vmem:[%s15 + $0x80] sm:$0xff]
      %v2184 = vld [vmem:[%s15 + $0x88] sm:$0xf]
      %v2185 = vld [vmem:[%s15 + $0x8c] sm:$0xff]
      %v2186 = vld [vmem:[%s15 + $0x94] sm:$0xff]
      %v2187 = vld [vmem:[%s15 + $0x9c] sm:$0xff]
      %v2188 = vld [vmem:[%s15 + $0xa4] sm:$0xf]
      %v2189 = vld [vmem:[%s15 + $0xa8] sm:$0xff]
      %v2190 = vld [vmem:[%s15 + $0xb0] sm:$0xff]
      %v2191 = vld [vmem:[%s15 + $0xb8] sm:$0xff]
      %v2192 = vld [vmem:[%s15 + $0xc0] sm:$0xf]
      %v2193 = vld [vmem:[%s15 + $0xc4] sm:$0xff]
      %v2194 = vld [vmem:[%s15 + $0xcc] sm:$0xff]
      %v2195 = vld [vmem:[%s15 + $0xd4] sm:$0xff]
      %v2196 = vld [vmem:[%s15 + $0xdc] sm:$0xf]
      %v2197 = vld [vmem:[%s15 + $0xe0] sm:$0xff]
      %v2198 = vld [vmem:[%s15 + $0xe8] sm:$0xff]
      %v2199 = vld [vmem:[%s15 + $0xf0] sm:$0xff]
      %v2200 = vld [vmem:[%s15 + $0xf8] sm:$0xf]
      %v2201 = vld [vmem:[%s15 + $0xfc] sm:$0xff]
      %v2202 = vld [vmem:[%s15 + $0x104] sm:$0xff]
      %v2203 = vld [vmem:[%s15 + $0x10c] sm:$0xff]
      %v2204 = vld [vmem:[%s15 + $0x114] sm:$0xf]
      %v2205 = vld [vmem:[%s15 + $0x118] sm:$0xff]
      %v2206 = vld [vmem:[%s15 + $0x120] sm:$0xff]
      %v2207 = vld [vmem:[%s15 + $0x128] sm:$0xff]
      %v2208 = vld [vmem:[%s15 + $0x130] sm:$0xf]
      %v2209 = vld [vmem:[%s15 + $0x134] sm:$0xff]
      %v2210 = vld [vmem:[%s15 + $0x13c] sm:$0xff]
      %v2211 = vld [vmem:[%s15 + $0x144] sm:$0xff]
      %v2212 = vld [vmem:[%s15 + $0x14c] sm:$0xf]
      %v2213 = vld [vmem:[%s15 + $0x150] sm:$0xff]
      %v2214 = vld [vmem:[%s15 + $0x158] sm:$0xff]
      %v2215 = vld [vmem:[%s15 + $0x160] sm:$0xff]
      %v2216 = vld [vmem:[%s15 + $0x168] sm:$0xf]
      %v2217 = vld [vmem:[%s15 + $0x16c] sm:$0xff]
      %v2218 = vld [vmem:[%s15 + $0x174] sm:$0xff]
      %v2219 = vld [vmem:[%s15 + $0x17c] sm:$0xff]
      %v2220 = vld [vmem:[%s15 + $0x184] sm:$0xf]
      %v2221 = vld [vmem:[%s15 + $0x188] sm:$0xff]
      %v2222 = vld [vmem:[%s15 + $0x190] sm:$0xff]
      %v2223 = vld [vmem:[%s15 + $0x198] sm:$0xff]
      %v2224 = vld [vmem:[%s15 + $0x1a0] sm:$0xf]
      %v2225 = vld [vmem:[%s15 + $0x1a4] sm:$0xff]
      %v2226 = vld [vmem:[%s15 + $0x1ac] sm:$0xff]
      %v2227 = vld [vmem:[%s15 + $0x1b4] sm:$0xff]
      %v2228 = vld [vmem:[%s15 + $0x1bc] sm:$0xf]
      %v2229 = vld [vmem:[%s16] sm:$0x7f]
      %v2231 = vlaneseq
      %v2232 = vshrl.u32 %v2231, 7
      %v2233 = vsub.s32 0, %v2232
      %v2234 = vrot.slane %v2229, %v2233
      %v2235 = vlaneseq
      %v2236 = vshrl.u32 %v2235, 7
      %v2237 = vsub.s32 1, %v2236
      %v2238 = vrot.slane %v2229, %v2237
      %v2239 = vlaneseq
      %v2240 = vshrl.u32 %v2239, 7
      %v2241 = vsub.s32 2, %v2240
      %v2242 = vrot.slane %v2229, %v2241
      %v2243 = vlaneseq
      %v2244 = vshrl.u32 %v2243, 7
      %v2245 = vsub.s32 3, %v2244
      %v2246 = vrot.slane %v2229, %v2245
      %v2247 = vlaneseq
      %v2248 = vshrl.u32 %v2247, 7
      %v2249 = vsub.s32 4, %v2248
      %v2250 = vrot.slane %v2229, %v2249
      %v2251 = vlaneseq
      %v2252 = vshrl.u32 %v2251, 7
      %v2253 = vsub.s32 5, %v2252
      %v2254 = vrot.slane %v2229, %v2253
      %v2255 = vlaneseq
      %v2256 = vshrl.u32 %v2255, 7
      %v2257 = vsub.s32 6, %v2256
      %v2258 = vrot.slane %v2229, %v2257
      %v2330 = vunpack.c.l.b16 %v2165
      %v2331 = vunpack.c.h.b16 %v2165
      %v2332 = vunpack.c.l.b16 %v2166
      %v2333 = vunpack.c.h.b16 %v2166
      %v2334 = vunpack.c.l.b16 %v2167
      %v2335 = vunpack.c.h.b16 %v2167
      %v2336 = vunpack.c.l.b16 %v2168
      %v2337 = vunpack.c.l.b16 %v2169
      %v2338 = vunpack.c.h.b16 %v2169
      %v2339 = vunpack.c.l.b16 %v2170
      %v2340 = vunpack.c.h.b16 %v2170
      %v2341 = vunpack.c.l.b16 %v2171
      %v2342 = vunpack.c.h.b16 %v2171
      %v2343 = vunpack.c.l.b16 %v2172
      %v2344 = vunpack.c.l.b16 %v2173
      %v2345 = vunpack.c.h.b16 %v2173
      %v2346 = vunpack.c.l.b16 %v2174
      %v2347 = vunpack.c.h.b16 %v2174
      %v2348 = vunpack.c.l.b16 %v2175
      %v2349 = vunpack.c.h.b16 %v2175
      %v2350 = vunpack.c.l.b16 %v2176
      %v2351 = vunpack.c.l.b16 %v2177
      %v2352 = vunpack.c.h.b16 %v2177
      %v2353 = vunpack.c.l.b16 %v2178
      %v2354 = vunpack.c.h.b16 %v2178
      %v2355 = vunpack.c.l.b16 %v2179
      %v2356 = vunpack.c.h.b16 %v2179
      %v2357 = vunpack.c.l.b16 %v2180
      %v2358 = vunpack.c.l.b16 %v2181
      %v2359 = vunpack.c.h.b16 %v2181
      %v2360 = vunpack.c.l.b16 %v2182
      %v2361 = vunpack.c.h.b16 %v2182
      %v2362 = vunpack.c.l.b16 %v2183
      %v2363 = vunpack.c.h.b16 %v2183
      %v2364 = vunpack.c.l.b16 %v2184
      %v2365 = vunpack.c.l.b16 %v2185
      %v2366 = vunpack.c.h.b16 %v2185
      %v2367 = vunpack.c.l.b16 %v2186
      %v2368 = vunpack.c.h.b16 %v2186
      %v2369 = vunpack.c.l.b16 %v2187
      %v2370 = vunpack.c.h.b16 %v2187
      %v2371 = vunpack.c.l.b16 %v2188
      %v2372 = vunpack.c.l.b16 %v2189
      %v2373 = vunpack.c.h.b16 %v2189
      %v2374 = vunpack.c.l.b16 %v2190
      %v2375 = vunpack.c.h.b16 %v2190
      %v2376 = vunpack.c.l.b16 %v2191
      %v2377 = vunpack.c.h.b16 %v2191
      %v2378 = vunpack.c.l.b16 %v2192
      %v2379 = vunpack.c.l.b16 %v2193
      %v2380 = vunpack.c.h.b16 %v2193
      %v2381 = vunpack.c.l.b16 %v2194
      %v2382 = vunpack.c.h.b16 %v2194
      %v2383 = vunpack.c.l.b16 %v2195
      %v2384 = vunpack.c.h.b16 %v2195
      %v2385 = vunpack.c.l.b16 %v2196
      %v2386 = vunpack.c.l.b16 %v2197
      %v2387 = vunpack.c.h.b16 %v2197
      %v2388 = vunpack.c.l.b16 %v2198
      %v2389 = vunpack.c.h.b16 %v2198
      %v2390 = vunpack.c.l.b16 %v2199
      %v2391 = vunpack.c.h.b16 %v2199
      %v2392 = vunpack.c.l.b16 %v2200
      %v2393 = vunpack.c.l.b16 %v2201
      %v2394 = vunpack.c.h.b16 %v2201
      %v2395 = vunpack.c.l.b16 %v2202
      %v2396 = vunpack.c.h.b16 %v2202
      %v2397 = vunpack.c.l.b16 %v2203
      %v2398 = vunpack.c.h.b16 %v2203
      %v2399 = vunpack.c.l.b16 %v2204
      %v2400 = vunpack.c.l.b16 %v2205
      %v2401 = vunpack.c.h.b16 %v2205
      %v2402 = vunpack.c.l.b16 %v2206
      %v2403 = vunpack.c.h.b16 %v2206
      %v2404 = vunpack.c.l.b16 %v2207
      %v2405 = vunpack.c.h.b16 %v2207
      %v2406 = vunpack.c.l.b16 %v2208
      %v2407 = vunpack.c.l.b16 %v2209
      %v2408 = vunpack.c.h.b16 %v2209
      %v2409 = vunpack.c.l.b16 %v2210
      %v2410 = vunpack.c.h.b16 %v2210
      %v2411 = vunpack.c.l.b16 %v2211
      %v2412 = vunpack.c.h.b16 %v2211
      %v2413 = vunpack.c.l.b16 %v2212
      %v2414 = vunpack.c.l.b16 %v2213
      %v2415 = vunpack.c.h.b16 %v2213
      %v2416 = vunpack.c.l.b16 %v2214
      %v2417 = vunpack.c.h.b16 %v2214
      %v2418 = vunpack.c.l.b16 %v2215
      %v2419 = vunpack.c.h.b16 %v2215
      %v2420 = vunpack.c.l.b16 %v2216
      %v2421 = vunpack.c.l.b16 %v2217
      %v2422 = vunpack.c.h.b16 %v2217
      %v2423 = vunpack.c.l.b16 %v2218
      %v2424 = vunpack.c.h.b16 %v2218
      %v2425 = vunpack.c.l.b16 %v2219
      %v2426 = vunpack.c.h.b16 %v2219
      %v2427 = vunpack.c.l.b16 %v2220
      %v2428 = vunpack.c.l.b16 %v2221
      %v2429 = vunpack.c.h.b16 %v2221
      %v2430 = vunpack.c.l.b16 %v2222
      %v2431 = vunpack.c.h.b16 %v2222
      %v2432 = vunpack.c.l.b16 %v2223
      %v2433 = vunpack.c.h.b16 %v2223
      %v2434 = vunpack.c.l.b16 %v2224
      %v2435 = vunpack.c.l.b16 %v2225
      %v2436 = vunpack.c.h.b16 %v2225
      %v2437 = vunpack.c.l.b16 %v2226
      %v2438 = vunpack.c.h.b16 %v2226
      %v2439 = vunpack.c.l.b16 %v2227
      %v2440 = vunpack.c.h.b16 %v2227
      %v2441 = vunpack.c.l.b16 %v2228
      %v2442 = vpack.c.b16 %v2337, %v2330
      %v2443 = vpack.c.b16 %v2338, %v2331
      %v2444 = vpack.c.b16 %v2339, %v2332
      %v2445 = vpack.c.b16 %v2340, %v2333
      %v2446 = vpack.c.b16 %v2341, %v2334
      %v2447 = vpack.c.b16 %v2342, %v2335
      %v2448 = vpack.c.b16 %v2343, %v2336
      %v2449 = vpack.c.b16 %v2351, %v2344
      %v2450 = vpack.c.b16 %v2352, %v2345
      %v2451 = vpack.c.b16 %v2353, %v2346
      %v2452 = vpack.c.b16 %v2354, %v2347
      %v2453 = vpack.c.b16 %v2355, %v2348
      %v2454 = vpack.c.b16 %v2356, %v2349
      %v2455 = vpack.c.b16 %v2357, %v2350
      %v2456 = vpack.c.b16 %v2365, %v2358
      %v2457 = vpack.c.b16 %v2366, %v2359
      %v2458 = vpack.c.b16 %v2367, %v2360
      %v2459 = vpack.c.b16 %v2368, %v2361
      %v2460 = vpack.c.b16 %v2369, %v2362
      %v2461 = vpack.c.b16 %v2370, %v2363
      %v2462 = vpack.c.b16 %v2371, %v2364
      %v2463 = vpack.c.b16 %v2379, %v2372
      %v2464 = vpack.c.b16 %v2380, %v2373
      %v2465 = vpack.c.b16 %v2381, %v2374
      %v2466 = vpack.c.b16 %v2382, %v2375
      %v2467 = vpack.c.b16 %v2383, %v2376
      %v2468 = vpack.c.b16 %v2384, %v2377
      %v2469 = vpack.c.b16 %v2385, %v2378
      %v2470 = vpack.c.b16 %v2393, %v2386
      %v2471 = vpack.c.b16 %v2394, %v2387
      %v2472 = vpack.c.b16 %v2395, %v2388
      %v2473 = vpack.c.b16 %v2396, %v2389
      %v2474 = vpack.c.b16 %v2397, %v2390
      %v2475 = vpack.c.b16 %v2398, %v2391
      %v2476 = vpack.c.b16 %v2399, %v2392
      %v2477 = vpack.c.b16 %v2407, %v2400
      %v2478 = vpack.c.b16 %v2408, %v2401
      %v2479 = vpack.c.b16 %v2409, %v2402
      %v2480 = vpack.c.b16 %v2410, %v2403
      %v2481 = vpack.c.b16 %v2411, %v2404
      %v2482 = vpack.c.b16 %v2412, %v2405
      %v2483 = vpack.c.b16 %v2413, %v2406
      %v2484 = vpack.c.b16 %v2421, %v2414
      %v2485 = vpack.c.b16 %v2422, %v2415
      %v2486 = vpack.c.b16 %v2423, %v2416
      %v2487 = vpack.c.b16 %v2424, %v2417
      %v2488 = vpack.c.b16 %v2425, %v2418
      %v2489 = vpack.c.b16 %v2426, %v2419
      %v2490 = vpack.c.b16 %v2427, %v2420
      %v2491 = vpack.c.b16 %v2435, %v2428
      %v2492 = vpack.c.b16 %v2436, %v2429
      %v2493 = vpack.c.b16 %v2437, %v2430
      %v2494 = vpack.c.b16 %v2438, %v2431
      %v2495 = vpack.c.b16 %v2439, %v2432
      %v2496 = vpack.c.b16 %v2440, %v2433
      %v2497 = vpack.c.b16 %v2441, %v2434
      %2554 = vmatprep.subr.bf16.mxu0 %v2492
      %2555 = vmatpush1.bf16.msra.mxu0 %v2491
      %2556 = vmatprep.subr.bf16.mxu0 %v2485
      %2557 = vmatpush1.bf16.msra.mxu0 %v2484
      %2558 = vmatprep.subr.bf16.mxu0 %v2478
      %2559 = vmatpush1.bf16.msra.mxu0 %v2477
      %2560 = vmatprep.subr.bf16.mxu0 %v2471
      %2561 = vmatpush1.bf16.msra.mxu0 %v2470
      %2562 = vmatprep.subr.bf16.mxu0 %v2464
      %2563 = vmatpush1.bf16.msra.mxu0 %v2463
      %2564 = vmatprep.subr.bf16.mxu0 %v2457
      %2565 = vmatpush1.bf16.msra.mxu0 %v2456
      %2566 = vmatprep.subr.bf16.mxu0 %v2450
      %2567 = vmatpush1.bf16.msra.mxu0 %v2449
      %2568 = vmatprep.subr.bf16.mxu0 %v2443
      %2569 = vmatpush1.bf16.msra.mxu0 %v2442
      %2570 = vmatprep.subr.bf16.mxu0 0
      %2571 = vmatpush2.bf16.msra.mxu0 0
      %2572 = vmatprep.subr.bf16.mxu0 0
      %2573 = vmatpush2.bf16.msra.mxu0 0
      %2574 = vmatprep.subr.bf16.mxu0 0
      %2575 = vmatpush2.bf16.msra.mxu0 0
      %2576 = vmatprep.subr.bf16.mxu0 0
      %2577 = vmatpush2.bf16.msra.mxu0 0
      %2578 = vmatprep.subr.bf16.mxu0 0
      %2579 = vmatpush2.bf16.msra.mxu0 0
      %2580 = vmatprep.subr.bf16.mxu0 0
      %2581 = vmatpush2.bf16.msra.mxu0 0
      %2582 = vmatprep.subr.bf16.mxu0 0
      %2583 = vmatpush2.bf16.msra.mxu0 0
      %2584 = vmatprep.subr.bf16.mxu0 0
      %2585 = vmatpush2.bf16.msra.mxu0 0
      %2586 = vmatprep.mubr.bf16.mxu0 0
      %2587 = vmatmul.mubr.bf16.gmra.mxu0 %v2161
      %v2588 = vpop.f32.mrf.mxu0
      %v2589 = vadd.f32 %v2234, %v2588
      %v2590 = vpop.f32.mrf.mxu0
      %v2591 = vadd.f32 %v2238, %v2590
      %v2592 = vpop.f32.mrf.mxu0
      %v2593 = vadd.f32 %v2234, %v2592
      %v2594 = vpop.f32.mrf.mxu0
      %v2595 = vadd.f32 %v2238, %v2594
      %2596 = vmatprep.mubr.bf16.mxu0 0
      %2597 = vmatmul.mubr.bf16.gmra.mxu0 %v2162
      %v2598 = vpop.f32.mrf.mxu0
      %v2599 = vadd.f32 %v2234, %v2598
      %v2600 = vpop.f32.mrf.mxu0
      %v2601 = vadd.f32 %v2238, %v2600
      %v2602 = vpop.f32.mrf.mxu0
      %v2603 = vadd.f32 %v2234, %v2602
      %v2604 = vpop.f32.mrf.mxu0
      %v2605 = vadd.f32 %v2238, %v2604
      %2606 = vmatprep.mubr.bf16.mxu0 0
      %2607 = vmatmul.mubr.bf16.gmra.mxu0 %v2163
      %v2608 = vpop.f32.mrf.mxu0
      %v2609 = vadd.f32 %v2234, %v2608
      %v2610 = vpop.f32.mrf.mxu0
      %v2611 = vadd.f32 %v2238, %v2610
      %v2612 = vpop.f32.mrf.mxu0
      %v2613 = vadd.f32 %v2234, %v2612
      %v2614 = vpop.f32.mrf.mxu0
      %v2615 = vadd.f32 %v2238, %v2614
      %2616 = vmatprep.mubr.bf16.mxu0 0
      %2617 = vmatmul.mubr.bf16.gmra.mxu0 %v2164
      %v2618 = vpop.f32.mrf.mxu0
      %v2619 = vadd.f32 %v2234, %v2618
      %v2620 = vpop.f32.mrf.mxu0
      %v2621 = vadd.f32 %v2238, %v2620
      %v2622 = vpop.f32.mrf.mxu0
      %v2623 = vadd.f32 %v2234, %v2622
      %v2624 = vpop.f32.mrf.mxu0
      %v2625 = vadd.f32 %v2238, %v2624
      %2626 = vdwg.mxu0
      %2627 = vmatprep.subr.bf16.mxu0 %v2494
      %2628 = vmatpush1.bf16.msra.mxu0 %v2493
      %2629 = vmatprep.subr.bf16.mxu0 %v2487
      %2630 = vmatpush1.bf16.msra.mxu0 %v2486
      %2631 = vmatprep.subr.bf16.mxu0 %v2480
      %2632 = vmatpush1.bf16.msra.mxu0 %v2479
      %2633 = vmatprep.subr.bf16.mxu0 %v2473
      %2634 = vmatpush1.bf16.msra.mxu0 %v2472
      %2635 = vmatprep.subr.bf16.mxu0 %v2466
      %2636 = vmatpush1.bf16.msra.mxu0 %v2465
      %2637 = vmatprep.subr.bf16.mxu0 %v2459
      %2638 = vmatpush1.bf16.msra.mxu0 %v2458
      %2639 = vmatprep.subr.bf16.mxu0 %v2452
      %2640 = vmatpush1.bf16.msra.mxu0 %v2451
      %2641 = vmatprep.subr.bf16.mxu0 %v2445
      %2642 = vmatpush1.bf16.msra.mxu0 %v2444
      %2643 = vmatprep.subr.bf16.mxu0 0
      %2644 = vmatpush2.bf16.msra.mxu0 0
      %2645 = vmatprep.subr.bf16.mxu0 0
      %2646 = vmatpush2.bf16.msra.mxu0 0
      %2647 = vmatprep.subr.bf16.mxu0 0
      %2648 = vmatpush2.bf16.msra.mxu0 0
      %2649 = vmatprep.subr.bf16.mxu0 0
      %2650 = vmatpush2.bf16.msra.mxu0 0
      %2651 = vmatprep.subr.bf16.mxu0 0
      %2652 = vmatpush2.bf16.msra.mxu0 0
      %2653 = vmatprep.subr.bf16.mxu0 0
      %2654 = vmatpush2.bf16.msra.mxu0 0
      %2655 = vmatprep.subr.bf16.mxu0 0
      %2656 = vmatpush2.bf16.msra.mxu0 0
      %2657 = vmatprep.subr.bf16.mxu0 0
      %2658 = vmatpush2.bf16.msra.mxu0 0
      %2659 = vmatprep.mubr.bf16.mxu0 0
      %2660 = vmatmul.mubr.bf16.gmra.mxu0 %v2161
      %v2661 = vpop.f32.mrf.mxu0
      %v2662 = vadd.f32 %v2242, %v2661
      %v2663 = vpop.f32.mrf.mxu0
      %v2664 = vadd.f32 %v2246, %v2663
      %v2665 = vpop.f32.mrf.mxu0
      %v2666 = vadd.f32 %v2242, %v2665
      %v2667 = vpop.f32.mrf.mxu0
      %v2668 = vadd.f32 %v2246, %v2667
      %2669 = vmatprep.mubr.bf16.mxu0 0
      %2670 = vmatmul.mubr.bf16.gmra.mxu0 %v2162
      %v2671 = vpop.f32.mrf.mxu0
      %v2672 = vadd.f32 %v2242, %v2671
      %v2673 = vpop.f32.mrf.mxu0
      %v2674 = vadd.f32 %v2246, %v2673
      %v2675 = vpop.f32.mrf.mxu0
      %v2676 = vadd.f32 %v2242, %v2675
      %v2677 = vpop.f32.mrf.mxu0
      %v2678 = vadd.f32 %v2246, %v2677
      %2679 = vmatprep.mubr.bf16.mxu0 0
      %2680 = vmatmul.mubr.bf16.gmra.mxu0 %v2163
      %v2681 = vpop.f32.mrf.mxu0
      %v2682 = vadd.f32 %v2242, %v2681
      %v2683 = vpop.f32.mrf.mxu0
      %v2684 = vadd.f32 %v2246, %v2683
      %v2685 = vpop.f32.mrf.mxu0
      %v2686 = vadd.f32 %v2242, %v2685
      %v2687 = vpop.f32.mrf.mxu0
      %v2688 = vadd.f32 %v2246, %v2687
      %2689 = vmatprep.mubr.bf16.mxu0 0
      %2690 = vmatmul.mubr.bf16.gmra.mxu0 %v2164
      %v2691 = vpop.f32.mrf.mxu0
      %v2692 = vadd.f32 %v2242, %v2691
      %v2693 = vpop.f32.mrf.mxu0
      %v2694 = vadd.f32 %v2246, %v2693
      %v2695 = vpop.f32.mrf.mxu0
      %v2696 = vadd.f32 %v2242, %v2695
      %v2697 = vpop.f32.mrf.mxu0
      %v2698 = vadd.f32 %v2246, %v2697
      %2699 = vdwg.mxu0
      %2700 = vmatprep.subr.bf16.mxu0 %v2496
      %2701 = vmatpush1.bf16.msra.mxu0 %v2495
      %2702 = vmatprep.subr.bf16.mxu0 %v2489
      %2703 = vmatpush1.bf16.msra.mxu0 %v2488
      %2704 = vmatprep.subr.bf16.mxu0 %v2482
      %2705 = vmatpush1.bf16.msra.mxu0 %v2481
      %2706 = vmatprep.subr.bf16.mxu0 %v2475
      %2707 = vmatpush1.bf16.msra.mxu0 %v2474
      %2708 = vmatprep.subr.bf16.mxu0 %v2468
      %2709 = vmatpush1.bf16.msra.mxu0 %v2467
      %2710 = vmatprep.subr.bf16.mxu0 %v2461
      %2711 = vmatpush1.bf16.msra.mxu0 %v2460
      %2712 = vmatprep.subr.bf16.mxu0 %v2454
      %2713 = vmatpush1.bf16.msra.mxu0 %v2453
      %2714 = vmatprep.subr.bf16.mxu0 %v2447
      %2715 = vmatpush1.bf16.msra.mxu0 %v2446
      %2716 = vmatprep.subr.bf16.mxu0 0
      %2717 = vmatpush2.bf16.msra.mxu0 0
      %2718 = vmatprep.subr.bf16.mxu0 0
      %2719 = vmatpush2.bf16.msra.mxu0 0
      %2720 = vmatprep.subr.bf16.mxu0 0
      %2721 = vmatpush2.bf16.msra.mxu0 0
      %2722 = vmatprep.subr.bf16.mxu0 0
      %2723 = vmatpush2.bf16.msra.mxu0 0
      %2724 = vmatprep.subr.bf16.mxu0 0
      %2725 = vmatpush2.bf16.msra.mxu0 0
      %2726 = vmatprep.subr.bf16.mxu0 0
      %2727 = vmatpush2.bf16.msra.mxu0 0
      %2728 = vmatprep.subr.bf16.mxu0 0
      %2729 = vmatpush2.bf16.msra.mxu0 0
      %2730 = vmatprep.subr.bf16.mxu0 0
      %2731 = vmatpush2.bf16.msra.mxu0 0
      %2732 = vmatprep.mubr.bf16.mxu0 0
      %2733 = vmatmul.mubr.bf16.gmra.mxu0 %v2161
      %v2734 = vpop.f32.mrf.mxu0
      %v2735 = vadd.f32 %v2250, %v2734
      %v2736 = vpop.f32.mrf.mxu0
      %v2737 = vadd.f32 %v2254, %v2736
      %v2738 = vpop.f32.mrf.mxu0
      %v2739 = vadd.f32 %v2250, %v2738
      %v2740 = vpop.f32.mrf.mxu0
      %v2741 = vadd.f32 %v2254, %v2740
      %2742 = vmatprep.mubr.bf16.mxu0 0
      %2743 = vmatmul.mubr.bf16.gmra.mxu0 %v2162
      %v2744 = vpop.f32.mrf.mxu0
      %v2745 = vadd.f32 %v2250, %v2744
      %v2746 = vpop.f32.mrf.mxu0
      %v2747 = vadd.f32 %v2254, %v2746
      %v2748 = vpop.f32.mrf.mxu0
      %v2749 = vadd.f32 %v2250, %v2748
      %v2750 = vpop.f32.mrf.mxu0
      %v2751 = vadd.f32 %v2254, %v2750
      %2752 = vmatprep.mubr.bf16.mxu0 0
      %2753 = vmatmul.mubr.bf16.gmra.mxu0 %v2163
      %v2754 = vpop.f32.mrf.mxu0
      %v2755 = vadd.f32 %v2250, %v2754
      %v2756 = vpop.f32.mrf.mxu0
      %v2757 = vadd.f32 %v2254, %v2756
      %v2758 = vpop.f32.mrf.mxu0
      %v2759 = vadd.f32 %v2250, %v2758
      %v2760 = vpop.f32.mrf.mxu0
      %v2761 = vadd.f32 %v2254, %v2760
      %2762 = vmatprep.mubr.bf16.mxu0 0
      %2763 = vmatmul.mubr.bf16.gmra.mxu0 %v2164
      %v2764 = vpop.f32.mrf.mxu0
      %v2765 = vadd.f32 %v2250, %v2764
      %v2766 = vpop.f32.mrf.mxu0
      %v2767 = vadd.f32 %v2254, %v2766
      %v2768 = vpop.f32.mrf.mxu0
      %v2769 = vadd.f32 %v2250, %v2768
      %v2770 = vpop.f32.mrf.mxu0
      %v2771 = vadd.f32 %v2254, %v2770
      %2772 = vdwg.mxu0
      %2773 = vmatprep.subr.bf16.mxu0 0
      %2774 = vmatpush1.bf16.msra.mxu0 %v2497
      %2775 = vmatprep.subr.bf16.mxu0 0
      %2776 = vmatpush1.bf16.msra.mxu0 %v2490
      %2777 = vmatprep.subr.bf16.mxu0 0
      %2778 = vmatpush1.bf16.msra.mxu0 %v2483
      %2779 = vmatprep.subr.bf16.mxu0 0
      %2780 = vmatpush1.bf16.msra.mxu0 %v2476
      %2781 = vmatprep.subr.bf16.mxu0 0
      %2782 = vmatpush1.bf16.msra.mxu0 %v2469
      %2783 = vmatprep.subr.bf16.mxu0 0
      %2784 = vmatpush1.bf16.msra.mxu0 %v2462
      %2785 = vmatprep.subr.bf16.mxu0 0
      %2786 = vmatpush1.bf16.msra.mxu0 %v2455
      %2787 = vmatprep.subr.bf16.mxu0 0
      %2788 = vmatpush1.bf16.msra.mxu0 %v2448
      %2789 = vmatprep.subr.bf16.mxu0 0
      %2790 = vmatpush2.bf16.msra.mxu0 0
      %2791 = vmatprep.subr.bf16.mxu0 0
      %2792 = vmatpush2.bf16.msra.mxu0 0
      %2793 = vmatprep.subr.bf16.mxu0 0
      %2794 = vmatpush2.bf16.msra.mxu0 0
      %2795 = vmatprep.subr.bf16.mxu0 0
      %2796 = vmatpush2.bf16.msra.mxu0 0
      %2797 = vmatprep.subr.bf16.mxu0 0
      %2798 = vmatpush2.bf16.msra.mxu0 0
      %2799 = vmatprep.subr.bf16.mxu0 0
      %2800 = vmatpush2.bf16.msra.mxu0 0
      %2801 = vmatprep.subr.bf16.mxu0 0
      %2802 = vmatpush2.bf16.msra.mxu0 0
      %2803 = vmatprep.subr.bf16.mxu0 0
      %2804 = vmatpush2.bf16.msra.mxu0 0
      %2805 = vmatprep.mubr.bf16.mxu0 0
      %2806 = vmatmul.mubr.bf16.gmra.mxu0 %v2161
      %v2807 = vpop.f32.mrf.mxu0
      %v2808 = vadd.f32 %v2258, %v2807
      %v2809 = vpop.f32.mrf.mxu0
      %v2810 = vpop.f32.mrf.mxu0
      %v2811 = vadd.f32 %v2258, %v2810
      %v2812 = vpop.f32.mrf.mxu0
      %2813 = vmatprep.mubr.bf16.mxu0 0
      %2814 = vmatmul.mubr.bf16.gmra.mxu0 %v2162
      %v2815 = vpop.f32.mrf.mxu0
      %v2816 = vadd.f32 %v2258, %v2815
      %v2817 = vpop.f32.mrf.mxu0
      %v2818 = vpop.f32.mrf.mxu0
      %v2819 = vadd.f32 %v2258, %v2818
      %v2820 = vpop.f32.mrf.mxu0
      %2821 = vmatprep.mubr.bf16.mxu0 0
      %2822 = vmatmul.mubr.bf16.gmra.mxu0 %v2163
      %v2823 = vpop.f32.mrf.mxu0
      %v2824 = vadd.f32 %v2258, %v2823
      %v2825 = vpop.f32.mrf.mxu0
      %v2826 = vpop.f32.mrf.mxu0
      %v2827 = vadd.f32 %v2258, %v2826
      %v2828 = vpop.f32.mrf.mxu0
      %2829 = vmatprep.mubr.bf16.mxu0 0
      %2830 = vmatmul.mubr.bf16.gmra.mxu0 %v2164
      %v2831 = vpop.f32.mrf.mxu0
      %v2832 = vadd.f32 %v2258, %v2831
      %v2833 = vpop.f32.mrf.mxu0
      %v2834 = vpop.f32.mrf.mxu0
      %v2835 = vadd.f32 %v2258, %v2834
      %v2836 = vpop.f32.mrf.mxu0
      %2837 = vdwg.mxu0
      %v2838 = vtanh.pop %v2589
      %v2839 = vtanh.pop %v2591
      %v2840 = vtanh.pop %v2662
      %v2841 = vtanh.pop %v2664
      %v2842 = vtanh.pop %v2735
      %v2843 = vtanh.pop %v2737
      %v2844 = vtanh.pop %v2808
      %v2845 = vtanh.pop %v2593
      %v2846 = vtanh.pop %v2595
      %v2847 = vtanh.pop %v2666
      %v2848 = vtanh.pop %v2668
      %v2849 = vtanh.pop %v2739
      %v2850 = vtanh.pop %v2741
      %v2851 = vtanh.pop %v2811
      %v2852 = vtanh.pop %v2599
      %v2853 = vtanh.pop %v2601
      %v2854 = vtanh.pop %v2672
      %v2855 = vtanh.pop %v2674
      %v2856 = vtanh.pop %v2745
      %v2857 = vtanh.pop %v2747
      %v2858 = vtanh.pop %v2816
      %v2859 = vtanh.pop %v2603
      %v2860 = vtanh.pop %v2605
      %v2861 = vtanh.pop %v2676
      %v2862 = vtanh.pop %v2678
      %v2863 = vtanh.pop %v2749
      %v2864 = vtanh.pop %v2751
      %v2865 = vtanh.pop %v2819
      %v2866 = vtanh.pop %v2609
      %v2867 = vtanh.pop %v2611
      %v2868 = vtanh.pop %v2682
      %v2869 = vtanh.pop %v2684
      %v2870 = vtanh.pop %v2755
      %v2871 = vtanh.pop %v2757
      %v2872 = vtanh.pop %v2824
      %v2873 = vtanh.pop %v2613
      %v2874 = vtanh.pop %v2615
      %v2875 = vtanh.pop %v2686
      %v2876 = vtanh.pop %v2688
      %v2877 = vtanh.pop %v2759
      %v2878 = vtanh.pop %v2761
      %v2879 = vtanh.pop %v2827
      %v2880 = vtanh.pop %v2619
      %v2881 = vtanh.pop %v2621
      %v2882 = vtanh.pop %v2692
      %v2883 = vtanh.pop %v2694
      %v2884 = vtanh.pop %v2765
      %v2885 = vtanh.pop %v2767
      %v2886 = vtanh.pop %v2832
      %v2887 = vtanh.pop %v2623
      %v2888 = vtanh.pop %v2625
      %v2889 = vtanh.pop %v2696
      %v2890 = vtanh.pop %v2698
      %v2891 = vtanh.pop %v2769
      %v2892 = vtanh.pop %v2771
      %v2893 = vtanh.pop %v2835
      %2894 = vst [vmem:[%s596] sm:$0xff] %v2838
      %2895 = vst [vmem:[%s596 + $0x8] sm:$0xff] %v2839
      %2896 = vst [vmem:[%s596 + $0x10] sm:$0xff] %v2840
      %2897 = vst [vmem:[%s596 + $0x18] sm:$0xff] %v2841
      %2898 = vst [vmem:[%s596 + $0x20] sm:$0xff] %v2842
      %2899 = vst [vmem:[%s596 + $0x28] sm:$0xff] %v2843
      %2900 = vst.msk [vmem:[%s596 + $0x30] sm:$0xff] %vm1170, %v2844
      %2901 = vst [vmem:[%s596 + $0x38] sm:$0xff] %v2845
      %2902 = vst [vmem:[%s596 + $0x40] sm:$0xff] %v2846
      %2903 = vst [vmem:[%s596 + $0x48] sm:$0xff] %v2847
      %2904 = vst [vmem:[%s596 + $0x50] sm:$0xff] %v2848
      %2905 = vst [vmem:[%s596 + $0x58] sm:$0xff] %v2849
      %2906 = vst [vmem:[%s596 + $0x60] sm:$0xff] %v2850
      %2907 = vst.msk [vmem:[%s596 + $0x68] sm:$0xff] %vm1170, %v2851
      %2908 = vst [vmem:[%s596 + $0x70] sm:$0xff] %v2852
      %2909 = vst [vmem:[%s596 + $0x78] sm:$0xff] %v2853
      %2910 = vst [vmem:[%s596 + $0x80] sm:$0xff] %v2854
      %2911 = vst [vmem:[%s596 + $0x88] sm:$0xff] %v2855
      %2912 = vst [vmem:[%s596 + $0x90] sm:$0xff] %v2856
      %2913 = vst [vmem:[%s596 + $0x98] sm:$0xff] %v2857
      %2914 = vst.msk [vmem:[%s596 + $0xa0] sm:$0xff] %vm1170, %v2858
      %2915 = vst [vmem:[%s596 + $0xa8] sm:$0xff] %v2859
      %2916 = vst [vmem:[%s596 + $0xb0] sm:$0xff] %v2860
      %2917 = vst [vmem:[%s596 + $0xb8] sm:$0xff] %v2861
      %2918 = vst [vmem:[%s596 + $0xc0] sm:$0xff] %v2862
      %2919 = vst [vmem:[%s596 + $0xc8] sm:$0xff] %v2863
      %2920 = vst [vmem:[%s596 + $0xd0] sm:$0xff] %v2864
      %2921 = vst.msk [vmem:[%s596 + $0xd8] sm:$0xff] %vm1170, %v2865
      %2922 = vst [vmem:[%s596 + $0xe0] sm:$0xff] %v2866
      %2923 = vst [vmem:[%s596 + $0xe8] sm:$0xff] %v2867
      %2924 = vst [vmem:[%s596 + $0xf0] sm:$0xff] %v2868
      %2925 = vst [vmem:[%s596 + $0xf8] sm:$0xff] %v2869
      %2926 = vst [vmem:[%s596 + $0x100] sm:$0xff] %v2870
      %2927 = vst [vmem:[%s596 + $0x108] sm:$0xff] %v2871
      %2928 = vst.msk [vmem:[%s596 + $0x110] sm:$0xff] %vm1170, %v2872
      %2929 = vst [vmem:[%s596 + $0x118] sm:$0xff] %v2873
      %2930 = vst [vmem:[%s596 + $0x120] sm:$0xff] %v2874
      %2931 = vst [vmem:[%s596 + $0x128] sm:$0xff] %v2875
      %2932 = vst [vmem:[%s596 + $0x130] sm:$0xff] %v2876
      %2933 = vst [vmem:[%s596 + $0x138] sm:$0xff] %v2877
      %2934 = vst [vmem:[%s596 + $0x140] sm:$0xff] %v2878
      %2935 = vst.msk [vmem:[%s596 + $0x148] sm:$0xff] %vm1170, %v2879
      %2936 = vst [vmem:[%s596 + $0x150] sm:$0xff] %v2880
      %2937 = vst [vmem:[%s596 + $0x158] sm:$0xff] %v2881
      %2938 = vst [vmem:[%s596 + $0x160] sm:$0xff] %v2882
      %2939 = vst [vmem:[%s596 + $0x168] sm:$0xff] %v2883
      %2940 = vst [vmem:[%s596 + $0x170] sm:$0xff] %v2884
      %2941 = vst [vmem:[%s596 + $0x178] sm:$0xff] %v2885
      %2942 = vst.msk [vmem:[%s596 + $0x180] sm:$0xff] %vm1170, %v2886
      %2943 = vst [vmem:[%s596 + $0x188] sm:$0xff] %v2887
      %2944 = vst [vmem:[%s596 + $0x190] sm:$0xff] %v2888
      %2945 = vst [vmem:[%s596 + $0x198] sm:$0xff] %v2889
      %2946 = vst [vmem:[%s596 + $0x1a0] sm:$0xff] %v2890
      %2947 = vst [vmem:[%s596 + $0x1a8] sm:$0xff] %v2891
      %2948 = vst [vmem:[%s596 + $0x1b0] sm:$0xff] %v2892
      %2949 = vst.msk [vmem:[%s596 + $0x1b8] sm:$0xff] %vm1170, %v2893
      %s2950 = smul.u32 8, %s30
      %p2951 = scmp.lt.s32.totalorder %s2950, 31
      %s2952 = scalar_select %p2951, %s2950, 31
      %s2953 = smul.addr %s2952, 8
      %s2954 = scalar_lea.vmem %s17, %s2953
      %s2955 = smul.u32 8, %s30
      %p2956 = scmp.lt.s32.totalorder %s2955, 31
      %s2957 = scalar_select %p2956, %s2955, 31
      %s2958 = smul.addr %s2957, 7
      %s2959 = smul.addr %s2958, 8
      %s2960 = scalar_lea.vmem %s18, %s2959
      // Predicated region
      $region89: #{autoencoder_forward.1} parent=87 // pred_check
        %p2961 = pneg %p410
      $region90: #{autoencoder_forward.1} parent=87 // pred_check_branch
        %2963 = sbr.rel (%p2961) target = $region92
      $region91: #{autoencoder_forward.1} parent=87 // pred_region
        %s2964 = smul.u32 8, %s30
      $region92: #{autoencoder_forward.1} parent=87 // pred_fallthru
        _
      // Predicated region
      $region93: #{autoencoder_forward.1} parent=87 // pred_check
        %p2965 = pneg %p436
      $region94: #{autoencoder_forward.1} parent=87 // pred_check_branch
        %2967 = sbr.rel (%p2965) target = $region96
      $region95: #{autoencoder_forward.1} parent=87 // pred_region
        %s2968 = smul.u32 8, %s30
      $region96: #{autoencoder_forward.1} parent=87 // pred_fallthru
        _
    $region88: #{autoencoder_forward.1} parent=5 // pred_fallthru
      _
    %p2969 = scmp.le.s32.totalorder 2, %s25
    // Predicated region
    $region97: #{autoencoder_forward.1} parent=5 // pred_check
      %p2970 = pneg %p2969
    $region98: #{autoencoder_forward.1} parent=5 // pred_check_branch
      %2972 = sbr.rel (%p2970) target = $region100
    $region99: #{autoencoder_forward.1} parent=5 // pred_region
      %s2973 = ssub.s32 %s25, 2
      // Predicated region
      $region101: #{autoencoder_forward.1} parent=99 // pred_check
        %p2974 = pneg %p416
      $region102: #{autoencoder_forward.1} parent=99 // pred_check_branch
        %2976 = sbr.rel (%p2974) target = $region104
      $region103: #{autoencoder_forward.1} parent=99 // pred_region
        %s2977 = smul.u32 8, %s31
        %p2978 = scmp.lt.s32.totalorder %s2977, 31
        %s2979 = scalar_select %p2978, %s2977, 31
        %s2980 = smul.addr %s2979, 8
        %s2981 = scalar_lea.vmem %s17, %s2980
      $region104: #{autoencoder_forward.1} parent=99 // pred_fallthru
        _
      // Predicated region
      $region105: #{autoencoder_forward.1} parent=99 // pred_check
        %p2982 = pneg %p442
      $region106: #{autoencoder_forward.1} parent=99 // pred_check_branch
        %2984 = sbr.rel (%p2982) target = $region108
      $region107: #{autoencoder_forward.1} parent=99 // pred_region
        %s2985 = smul.u32 8, %s31
        %p2986 = scmp.lt.s32.totalorder %s2985, 31
        %s2987 = scalar_select %p2986, %s2985, 31
        %s2988 = smul.addr %s2987, 7
        %s2989 = smul.addr %s2988, 8
        %s2990 = scalar_lea.vmem %s18, %s2989
      $region108: #{autoencoder_forward.1} parent=99 // pred_fallthru
        _
    $region100: #{autoencoder_forward.1} parent=5 // pred_fallthru
      _
  $region6: #{autoencoder_forward.1} parent=0 // loop_footer
    %s29 = sadd.s32 1, %s25
  $region7: #{autoencoder_forward.1} parent=0 // loop_footer_branch
    %24 = sbr.rel target = $region3
  $region8: #{autoencoder_forward.1} parent=0 // loop_exit
    _

</llo_original>
